<compile_context>
chip_gen: v5e
topology: v5e:2x2
jax: 0.10.0
libtpu: 0.0.40
codegen_flags: <defaults>
</compile_context>

<pallas_src>
import functools
from math import sqrt

import jax
import jax.numpy as jnp
from jax.experimental import pallas as pl
from jax.experimental.pallas import tpu as pltpu


def decoder_layer_kernel(xh_ref, crh_ref,
                         ln1w_ref, ln1b_ref, ln2w_ref, ln2b_ref,
                         ln3w_ref, ln3b_ref,
                         w1_ref, b1_ref, w2_ref, b2_ref,
                         out_ref, *, mm_dtype):
    f32 = jnp.float32

    # ---- hoisted loads (read every parameter exactly once, no re-broadcasts) ----
    xh = xh_ref[...]     # (H, L, E) f32 -- x already split into heads by the wrapper
    crh = crh_ref[...]   # (H, S, E) f32
    H, L, E = xh.shape
    scale = 1.0 / sqrt(E)

    ln1w = ln1w_ref[...]    # (H, 1, E)  norm_1 gamma in head space
    ln1b = ln1b_ref[...]
    ln2w = ln2w_ref[...]
    ln2b = ln2b_ref[...]
    ln3w = ln3w_ref[...]    # (1, D)
    ln3b = ln3b_ref[...]
    w1 = w1_ref[...]        # (D, F)  (already cast to mm_dtype in the wrapper)
    b1 = b1_ref[...]        # (1, F)  f32
    w2 = w2_ref[...]        # (F, D)
    b2 = b2_ref[...]        # (1, D)  f32

    def softmax_lastdim(s):
        # s: (H, L, S) f32.  exp + reciprocal go to the EUP slot; one Newton step
        # restores ~f32 accuracy of the approximate reciprocal.
        m = jnp.max(s, axis=-1, keepdims=True)
        e = jnp.exp(s - m)
        d = jnp.sum(e, axis=-1, keepdims=True)
        inv = pl.reciprocal(d, approx=True)
        inv = inv * (2.0 - d * inv)
        return e * inv

    def mha(q_f32, k_mm, v_mm):
        # Head-batched attention: q (H, L, E) f32; k/v (H, S, E) already in mm_dtype.
        qm = q_f32.astype(mm_dtype)
        s = jnp.einsum('hle,hse->hls', qm, k_mm,
                       preferred_element_type=f32) * scale
        a = softmax_lastdim(s)
        return jnp.einsum('hls,hse->hle', a.astype(mm_dtype), v_mm,
                          preferred_element_type=f32)          # (H, L, E) f32

    def head_ln(v, w, b, eps=1e-5):
        # LayerNorm over the full feature dim D = H*E, evaluated in head space
        # (H, L, E) so no head-merge is needed on the residual path.  All f32.
        n = H * E
        s = jnp.sum(v, axis=-1, keepdims=True)          # (H, L, 1)
        tot = s[0]
        for h in range(1, H):                           # static H, tiny adds
            tot = tot + s[h]                            # (L, 1)
        mu = tot * (1.0 / n)
        c = v - mu
        s2 = jnp.sum(c * c, axis=-1, keepdims=True)
        tot2 = s2[0]
        for h in range(1, H):
            tot2 = tot2 + s2[h]
        inv = jax.lax.rsqrt(tot2 * (1.0 / n) + eps)     # (L, 1)
        return c * inv * w + b                          # w, b broadcast from (H, 1, E)

    xm = xh.astype(mm_dtype)
    crm = crh.astype(mm_dtype)

    # --- x = norm_1(x + self_attention(x, x, x))   (attn_mask=None -> no masking) ---
    sa = mha(xh, xm, xm)
    x1h = head_ln(xh + sa, ln1w, ln1b)

    # --- x = norm_2(x + cross_attention(x, cross, cross)) ---
    ca = mha(x1h, crm, crm)
    x2h = head_ln(x1h + ca, ln2w, ln2b)

    # Single layout fixup: merge heads back to (L, D) for the FFN / final LayerNorm.
    x2 = jnp.concatenate([x2h[h] for h in range(H)], axis=-1)   # (L, D) f32

    # --- FFN: relu(x @ W1 + b1) @ W2 + b2   (Conv1d kernel_size=1, dropout=identity) ---
    hmid = jnp.dot(x2.astype(mm_dtype), w1, preferred_element_type=f32) + b1
    hmid = jnp.maximum(hmid, 0.0)                                # (L, F) f32
    y = jnp.dot(hmid.astype(mm_dtype), w2, preferred_element_type=f32) + b2

    # --- return norm_3(x + y) ---
    z = x2 + y
    mu = jnp.mean(z, axis=-1, keepdims=True)
    var = jnp.mean((z - mu) ** 2, axis=-1, keepdims=True)
    out = (z - mu) * jax.lax.rsqrt(var + 1e-5) * ln3w + ln3b
    out_ref[...] = out.astype(out_ref.dtype)


def decoder_layer(x, cross, params, n_heads, matmul_dtype=None):
    """matmul_dtype=None keeps the matmuls in the input dtype (f32 = PyTorch-faithful);
    jnp.bfloat16 uses bf16 MXU operands with f32 accumulation (v6e/v7x fast path)."""
    B, L, D = x.shape
    Bc, S, Dc = cross.shape
    assert Bc == B and Dc == D and D % n_heads == 0
    H = n_heads
    E = D // H
    d_ff = params["w1"].shape[1]
    mm = jnp.dtype(matmul_dtype) if matmul_dtype is not None else x.dtype

    # Layout plumbing in the wrapper (cheap XLA ops): split heads once so the kernel
    # can use a single head-batched contraction per attention.
    x_h = x.reshape(B, L, H, E).transpose(0, 2, 1, 3)        # (B, H, L, E)
    cr_h = cross.reshape(B, S, H, E).transpose(0, 2, 1, 3)   # (B, H, S, E)

    def head_param(p):  # (1, D) LayerNorm param -> head space (H, 1, E)
        return p.reshape(H, E)[:, None, :]

    ln1w_h, ln1b_h = head_param(params["ln1w"]), head_param(params["ln1b"])
    ln2w_h, ln2b_h = head_param(params["ln2w"]), head_param(params["ln2b"])
    # Only matmul operands are cast; biases / LN params / activations stay f32.
    w1 = params["w1"].astype(mm)
    w2 = params["w2"].astype(mm)

    def rep(shape):
        # Whole-array parameter block with a constant index_map: the block stays
        # resident across grid steps (no per-step weight re-DMA).
        return pl.BlockSpec(shape, lambda b: (0,) * len(shape))

    in_specs = [
        pl.BlockSpec((None, H, L, E), lambda b: (b, 0, 0, 0)),   # x heads (one batch row)
        pl.BlockSpec((None, H, S, E), lambda b: (b, 0, 0, 0)),   # cross heads
        rep((H, 1, E)), rep((H, 1, E)),                          # norm_1 w, b (head space)
        rep((H, 1, E)), rep((H, 1, E)),                          # norm_2 w, b (head space)
        rep((1, D)), rep((1, D)),                                # norm_3 w, b
        rep((D, d_ff)), rep((1, d_ff)),                          # ffn conv_1 (as matmul)
        rep((d_ff, D)), rep((1, D)),                             # ffn conv_2 (as matmul)
    ]
    out_spec = pl.BlockSpec((None, L, D), lambda b: (b, 0, 0))

    kernel = functools.partial(decoder_layer_kernel, mm_dtype=mm)
    return pl.pallas_call(
        kernel,
        out_shape=jax.ShapeDtypeStruct((B, L, D), x.dtype),
        grid=(B,),  # parallel batch axis: feeds both v7x TensorCores; only B tiny steps elsewhere
        in_specs=in_specs,
        out_specs=out_spec,
        compiler_params=pltpu.CompilerParams(dimension_semantics=("parallel",)),
    )(x_h, cr_h,
      ln1w_h, ln1b_h, ln2w_h, ln2b_h,
      params["ln3w"], params["ln3b"],
      w1, params["b1"], w2, params["b2"])


def reference(x, cross, params, n_heads):
    """Pure-JAX f32 reference mirroring the PyTorch forward (eval mode)."""
    def ln(v, w, b):
        mu = v.mean(-1, keepdims=True)
        var = ((v - mu) ** 2).mean(-1, keepdims=True)
        return (v - mu) / jnp.sqrt(var + 1e-5) * w + b

    def softmax(s):
        m = jnp.max(s, axis=-1, keepdims=True)
        e = jnp.exp(s - m)
        return e / jnp.sum(e, axis=-1, keepdims=True)

    def attn(q, k, v):
        B, L, D = q.shape
        S = k.shape[1]
        E = D // n_heads
        qh = q.reshape(B, L, n_heads, E)
        kh = k.reshape(B, S, n_heads, E)
        vh = v.reshape(B, S, n_heads, E)
        s = jnp.einsum("blhe,bshe->bhls", qh, kh) * (1.0 / sqrt(E))
        a = softmax(s)
        o = jnp.einsum("bhls,bshd->blhd", a, vh)
        return o.reshape(B, L, D)

    x = ln(x + attn(x, x, x), params["ln1w"][0], params["ln1b"][0])
    x = ln(x + attn(x, cross, cross), params["ln2w"][0], params["ln2b"][0])
    h = jnp.maximum(x @ params["w1"] + params["b1"][0], 0.0)
    y = h @ params["w2"] + params["b2"][0]
    return ln(x + y, params["ln3w"][0], params["ln3b"][0])


if __name__ == "__main__":
    # small shapes implied by the module: d_model=32, n_heads=4, d_ff=4*d_model
    B, L, S, D, H = 2, 8, 8, 32, 4
    d_ff = 4 * D

    key = jax.random.PRNGKey(0)
    ks = jax.random.split(key, 6)
    x = jax.random.normal(ks[0], (B, L, D), jnp.float32)
    cross = jax.random.normal(ks[1], (B, S, D), jnp.float32)

    params = {
        "ln1w": jnp.ones((1, D), jnp.float32),
        "ln1b": jnp.zeros((1, D), jnp.float32),
        "ln2w": jnp.full((1, D), 1.1, jnp.float32),
        "ln2b": jnp.full((1, D), 0.05, jnp.float32),
        "ln3w": jnp.full((1, D), 0.9, jnp.float32),
        "ln3b": jnp.full((1, D), -0.05, jnp.float32),
        "w1": 0.1 * jax.random.normal(ks[2], (D, d_ff), jnp.float32),
        "b1": 0.1 * jax.random.normal(ks[3], (1, d_ff), jnp.float32),
        "w2": 0.1 * jax.random.normal(ks[4], (d_ff, D), jnp.float32),
        "b2": 0.1 * jax.random.normal(ks[5], (1, D), jnp.float32),
    }

    ref = reference(x, cross, params, H)

    # 1) f32 matmuls: faithful to the PyTorch forward.
    out_f32 = decoder_layer(x, cross, params, H)
    jax.block_until_ready(out_f32)
    err_f32 = float(jnp.max(jnp.abs(out_f32 - ref)))
    assert jnp.allclose(out_f32, ref, atol=1e-3, rtol=1e-3), f"f32 max abs err = {err_f32}"

    # 2) bf16 MXU operands (v6e/v7x fast path), f32 accumulation + f32 LN/softmax/residuals.
    #    Looser tolerance only reflects bf16 operand rounding in the matmuls.
    out_bf16 = decoder_layer(x, cross, params, H, matmul_dtype=jnp.bfloat16)
    jax.block_until_ready(out_bf16)
    err_bf16 = float(jnp.max(jnp.abs(out_bf16 - ref)))
    assert jnp.allclose(out_bf16, ref, atol=1e-1, rtol=1e-1), f"bf16 max abs err = {err_bf16}"

    print("KERNEL_OK")
</pallas_src>

<mosaic_0001>
module attributes {stable_mosaic.version = 11 : i64} {
  func.func @decoder_layer_kernel(%arg0: i32, %arg1: memref<1x4x8x8xf32, #tpu.memory_space<vmem>>, %arg2: memref<1x4x8x8xf32, #tpu.memory_space<vmem>>, %arg3: memref<4x1x8xf32, #tpu.memory_space<vmem>>, %arg4: memref<4x1x8xf32, #tpu.memory_space<vmem>>, %arg5: memref<4x1x8xf32, #tpu.memory_space<vmem>>, %arg6: memref<4x1x8xf32, #tpu.memory_space<vmem>>, %arg7: memref<1x32xf32, #tpu.memory_space<vmem>>, %arg8: memref<1x32xf32, #tpu.memory_space<vmem>>, %arg9: memref<32x128xf32, #tpu.memory_space<vmem>>, %arg10: memref<1x128xf32, #tpu.memory_space<vmem>>, %arg11: memref<128x32xf32, #tpu.memory_space<vmem>>, %arg12: memref<1x32xf32, #tpu.memory_space<vmem>>, %arg13: memref<1x8x32xf32, #tpu.memory_space<vmem>>) attributes {dimension_semantics = [#tpu.dimension_semantics<parallel>], iteration_bounds = array<i64: 2>, scalar_prefetch = 0 : i64, scratch_operands = 0 : i64, tpu.core_type = #tpu.core_type<tc>, window_params = [{transform_indices = @transform_0, window_bounds = array<i64: 1, 4, 8, 8>}, {transform_indices = @transform_1, window_bounds = array<i64: 1, 4, 8, 8>}, {pipeline_mode = #tpu.pipeline_mode<synchronous>, transform_indices = @transform_2, window_bounds = array<i64: 4, 1, 8>}, {pipeline_mode = #tpu.pipeline_mode<synchronous>, transform_indices = @transform_3, window_bounds = array<i64: 4, 1, 8>}, {pipeline_mode = #tpu.pipeline_mode<synchronous>, transform_indices = @transform_4, window_bounds = array<i64: 4, 1, 8>}, {pipeline_mode = #tpu.pipeline_mode<synchronous>, transform_indices = @transform_5, window_bounds = array<i64: 4, 1, 8>}, {pipeline_mode = #tpu.pipeline_mode<synchronous>, transform_indices = @transform_6, window_bounds = array<i64: 1, 32>}, {pipeline_mode = #tpu.pipeline_mode<synchronous>, transform_indices = @transform_7, window_bounds = array<i64: 1, 32>}, {pipeline_mode = #tpu.pipeline_mode<synchronous>, transform_indices = @transform_8, window_bounds = array<i64: 32, 128>}, {pipeline_mode = #tpu.pipeline_mode<synchronous>, transform_indices = @transform_9, window_bounds = array<i64: 1, 128>}, {pipeline_mode = #tpu.pipeline_mode<synchronous>, transform_indices = @transform_10, window_bounds = array<i64: 128, 32>}, {pipeline_mode = #tpu.pipeline_mode<synchronous>, transform_indices = @transform_11, window_bounds = array<i64: 1, 32>}, {transform_indices = @transform_12, window_bounds = array<i64: 1, 8, 32>}]} {
    %c0 = arith.constant 0 : index
    %c0_0 = arith.constant 0 : index
    %c0_1 = arith.constant 0 : index
    %c0_2 = arith.constant 0 : index
    %0 = vector.load %arg1[%c0, %c0_0, %c0_1, %c0_2] : memref<1x4x8x8xf32, #tpu.memory_space<vmem>>, vector<1x4x8x8xf32>
    %1 = vector.shape_cast %0 : vector<1x4x8x8xf32> to vector<4x8x8xf32>
    %c0_3 = arith.constant 0 : index
    %c0_4 = arith.constant 0 : index
    %c0_5 = arith.constant 0 : index
    %c0_6 = arith.constant 0 : index
    %2 = vector.load %arg2[%c0_3, %c0_4, %c0_5, %c0_6] : memref<1x4x8x8xf32, #tpu.memory_space<vmem>>, vector<1x4x8x8xf32>
    %3 = vector.shape_cast %2 : vector<1x4x8x8xf32> to vector<4x8x8xf32>
    %c0_7 = arith.constant 0 : index
    %c0_8 = arith.constant 0 : index
    %c0_9 = arith.constant 0 : index
    %4 = vector.load %arg3[%c0_7, %c0_8, %c0_9] : memref<4x1x8xf32, #tpu.memory_space<vmem>>, vector<4x1x8xf32>
    %c0_10 = arith.constant 0 : index
    %c0_11 = arith.constant 0 : index
    %c0_12 = arith.constant 0 : index
    %5 = vector.load %arg4[%c0_10, %c0_11, %c0_12] : memref<4x1x8xf32, #tpu.memory_space<vmem>>, vector<4x1x8xf32>
    %c0_13 = arith.constant 0 : index
    %c0_14 = arith.constant 0 : index
    %c0_15 = arith.constant 0 : index
    %6 = vector.load %arg5[%c0_13, %c0_14, %c0_15] : memref<4x1x8xf32, #tpu.memory_space<vmem>>, vector<4x1x8xf32>
    %c0_16 = arith.constant 0 : index
    %c0_17 = arith.constant 0 : index
    %c0_18 = arith.constant 0 : index
    %7 = vector.load %arg6[%c0_16, %c0_17, %c0_18] : memref<4x1x8xf32, #tpu.memory_space<vmem>>, vector<4x1x8xf32>
    %c0_19 = arith.constant 0 : index
    %c0_20 = arith.constant 0 : index
    %8 = vector.load %arg7[%c0_19, %c0_20] : memref<1x32xf32, #tpu.memory_space<vmem>>, vector<1x32xf32>
    %c0_21 = arith.constant 0 : index
    %c0_22 = arith.constant 0 : index
    %9 = vector.load %arg8[%c0_21, %c0_22] : memref<1x32xf32, #tpu.memory_space<vmem>>, vector<1x32xf32>
    %c0_23 = arith.constant 0 : index
    %c0_24 = arith.constant 0 : index
    %10 = vector.load %arg9[%c0_23, %c0_24] : memref<32x128xf32, #tpu.memory_space<vmem>>, vector<32x128xf32>
    %c0_25 = arith.constant 0 : index
    %c0_26 = arith.constant 0 : index
    %11 = vector.load %arg10[%c0_25, %c0_26] : memref<1x128xf32, #tpu.memory_space<vmem>>, vector<1x128xf32>
    %c0_27 = arith.constant 0 : index
    %c0_28 = arith.constant 0 : index
    %12 = vector.load %arg11[%c0_27, %c0_28] : memref<128x32xf32, #tpu.memory_space<vmem>>, vector<128x32xf32>
    %c0_29 = arith.constant 0 : index
    %c0_30 = arith.constant 0 : index
    %13 = vector.load %arg12[%c0_29, %c0_30] : memref<1x32xf32, #tpu.memory_space<vmem>>, vector<1x32xf32>
    "tpu.trace_start"() <{level = 10 : i32, message = "hle,hse->hls"}> : () -> ()
    %cst = arith.constant dense<0.000000e+00> : vector<4x8x8xf32>
    %14 = tpu.matmul %1, %1, %cst {dimension_numbers = #tpu.dot_dimension_numbers<[2], [2], [1], [1], [0, 0, 0, 1, 1, 1], [0], [0]>} : vector<4x8x8xf32>, vector<4x8x8xf32>, vector<4x8x8xf32> -> vector<4x8x8xf32>
    "tpu.trace_stop"() : () -> ()
    %cst_31 = arith.constant 0.353553385 : f32
    %15 = vector.broadcast %cst_31 : f32 to vector<4x8x8xf32>
    %16 = arith.mulf %14, %15 : vector<4x8x8xf32>
    %cst_32 = arith.constant dense<0xFF800000> : vector<4x8xf32>
    %17 = vector.multi_reduction <maximumf>, %16, %cst_32 [2] : vector<4x8x8xf32> to vector<4x8xf32>
    %18 = vector.shape_cast %17 : vector<4x8xf32> to vector<4x8x1xf32>
    %19 = vector.broadcast %18 : vector<4x8x1xf32> to vector<4x8x8xf32>
    %20 = arith.subf %16, %19 : vector<4x8x8xf32>
    %21 = math.exp %20 : vector<4x8x8xf32>
    %cst_33 = arith.constant dense<0.000000e+00> : vector<4x8xf32>
    %22 = vector.multi_reduction <add>, %21, %cst_33 [2] : vector<4x8x8xf32> to vector<4x8xf32>
    %23 = vector.shape_cast %22 : vector<4x8xf32> to vector<4x8x1xf32>
    %24 = tpu.reciprocal %23 {approx = true} : vector<4x8x1xf32> -> vector<4x8x1xf32>
    %25 = arith.mulf %23, %24 : vector<4x8x1xf32>
    %cst_34 = arith.constant 2.000000e+00 : f32
    %26 = vector.broadcast %cst_34 : f32 to vector<4x8x1xf32>
    %27 = arith.subf %26, %25 : vector<4x8x1xf32>
    %28 = arith.mulf %24, %27 : vector<4x8x1xf32>
    %29 = vector.broadcast %28 : vector<4x8x1xf32> to vector<4x8x8xf32>
    %30 = arith.mulf %21, %29 : vector<4x8x8xf32>
    "tpu.trace_start"() <{level = 10 : i32, message = "hls,hse->hle"}> : () -> ()
    %cst_35 = arith.constant dense<0.000000e+00> : vector<4x8x8xf32>
    %31 = tpu.matmul %30, %1, %cst_35 {dimension_numbers = #tpu.dot_dimension_numbers<[2], [1], [1], [2], [0, 0, 0, 1, 1, 2], [0], [0]>} : vector<4x8x8xf32>, vector<4x8x8xf32>, vector<4x8x8xf32> -> vector<4x8x8xf32>
    "tpu.trace_stop"() : () -> ()
    %32 = arith.addf %1, %31 : vector<4x8x8xf32>
    %cst_36 = arith.constant dense<0.000000e+00> : vector<4x8xf32>
    %33 = vector.multi_reduction <add>, %32, %cst_36 [2] : vector<4x8x8xf32> to vector<4x8xf32>
    %34 = vector.shape_cast %33 : vector<4x8xf32> to vector<4x8x1xf32>
    %35 = vector.extract_strided_slice %34 {offsets = [0, 0, 0], sizes = [1, 8, 1], strides = [1, 1, 1]} : vector<4x8x1xf32> to vector<1x8x1xf32>
    %36 = vector.shape_cast %35 : vector<1x8x1xf32> to vector<8x1xf32>
    %37 = vector.extract_strided_slice %34 {offsets = [1, 0, 0], sizes = [1, 8, 1], strides = [1, 1, 1]} : vector<4x8x1xf32> to vector<1x8x1xf32>
    %38 = vector.shape_cast %37 : vector<1x8x1xf32> to vector<8x1xf32>
    %39 = arith.addf %36, %38 : vector<8x1xf32>
    %40 = vector.extract_strided_slice %34 {offsets = [2, 0, 0], sizes = [1, 8, 1], strides = [1, 1, 1]} : vector<4x8x1xf32> to vector<1x8x1xf32>
    %41 = vector.shape_cast %40 : vector<1x8x1xf32> to vector<8x1xf32>
    %42 = arith.addf %39, %41 : vector<8x1xf32>
    %43 = vector.extract_strided_slice %34 {offsets = [3, 0, 0], sizes = [1, 8, 1], strides = [1, 1, 1]} : vector<4x8x1xf32> to vector<1x8x1xf32>
    %44 = vector.shape_cast %43 : vector<1x8x1xf32> to vector<8x1xf32>
    %45 = arith.addf %42, %44 : vector<8x1xf32>
    %cst_37 = arith.constant 3.125000e-02 : f32
    %46 = vector.broadcast %cst_37 : f32 to vector<8x1xf32>
    %47 = arith.mulf %45, %46 : vector<8x1xf32>
    %48 = vector.shape_cast %47 : vector<8x1xf32> to vector<1x8x1xf32>
    %49 = vector.broadcast %48 : vector<1x8x1xf32> to vector<4x8x8xf32>
    %50 = arith.subf %32, %49 : vector<4x8x8xf32>
    %51 = arith.mulf %50, %50 : vector<4x8x8xf32>
    %cst_38 = arith.constant dense<0.000000e+00> : vector<4x8xf32>
    %52 = vector.multi_reduction <add>, %51, %cst_38 [2] : vector<4x8x8xf32> to vector<4x8xf32>
    %53 = vector.shape_cast %52 : vector<4x8xf32> to vector<4x8x1xf32>
    %54 = vector.extract_strided_slice %53 {offsets = [0, 0, 0], sizes = [1, 8, 1], strides = [1, 1, 1]} : vector<4x8x1xf32> to vector<1x8x1xf32>
    %55 = vector.shape_cast %54 : vector<1x8x1xf32> to vector<8x1xf32>
    %56 = vector.extract_strided_slice %53 {offsets = [1, 0, 0], sizes = [1, 8, 1], strides = [1, 1, 1]} : vector<4x8x1xf32> to vector<1x8x1xf32>
    %57 = vector.shape_cast %56 : vector<1x8x1xf32> to vector<8x1xf32>
    %58 = arith.addf %55, %57 : vector<8x1xf32>
    %59 = vector.extract_strided_slice %53 {offsets = [2, 0, 0], sizes = [1, 8, 1], strides = [1, 1, 1]} : vector<4x8x1xf32> to vector<1x8x1xf32>
    %60 = vector.shape_cast %59 : vector<1x8x1xf32> to vector<8x1xf32>
    %61 = arith.addf %58, %60 : vector<8x1xf32>
    %62 = vector.extract_strided_slice %53 {offsets = [3, 0, 0], sizes = [1, 8, 1], strides = [1, 1, 1]} : vector<4x8x1xf32> to vector<1x8x1xf32>
    %63 = vector.shape_cast %62 : vector<1x8x1xf32> to vector<8x1xf32>
    %64 = arith.addf %61, %63 : vector<8x1xf32>
    %cst_39 = arith.constant 3.125000e-02 : f32
    %65 = vector.broadcast %cst_39 : f32 to vector<8x1xf32>
    %66 = arith.mulf %64, %65 : vector<8x1xf32>
    %cst_40 = arith.constant 9.99999974E-6 : f32
    %67 = vector.broadcast %cst_40 : f32 to vector<8x1xf32>
    %68 = arith.addf %66, %67 : vector<8x1xf32>
    %69 = math.rsqrt %68 : vector<8x1xf32>
    %70 = vector.shape_cast %69 : vector<8x1xf32> to vector<1x8x1xf32>
    %71 = vector.broadcast %70 : vector<1x8x1xf32> to vector<4x8x8xf32>
    %72 = arith.mulf %50, %71 : vector<4x8x8xf32>
    %73 = vector.broadcast %4 : vector<4x1x8xf32> to vector<4x8x8xf32>
    %74 = arith.mulf %72, %73 : vector<4x8x8xf32>
    %75 = vector.broadcast %5 : vector<4x1x8xf32> to vector<4x8x8xf32>
    %76 = arith.addf %74, %75 : vector<4x8x8xf32>
    "tpu.trace_start"() <{level = 10 : i32, message = "hle,hse->hls"}> : () -> ()
    %cst_41 = arith.constant dense<0.000000e+00> : vector<4x8x8xf32>
    %77 = tpu.matmul %76, %3, %cst_41 {dimension_numbers = #tpu.dot_dimension_numbers<[2], [2], [1], [1], [0, 0, 0, 1, 1, 1], [0], [0]>} : vector<4x8x8xf32>, vector<4x8x8xf32>, vector<4x8x8xf32> -> vector<4x8x8xf32>
    "tpu.trace_stop"() : () -> ()
    %cst_42 = arith.constant 0.353553385 : f32
    %78 = vector.broadcast %cst_42 : f32 to vector<4x8x8xf32>
    %79 = arith.mulf %77, %78 : vector<4x8x8xf32>
    %cst_43 = arith.constant dense<0xFF800000> : vector<4x8xf32>
    %80 = vector.multi_reduction <maximumf>, %79, %cst_43 [2] : vector<4x8x8xf32> to vector<4x8xf32>
    %81 = vector.shape_cast %80 : vector<4x8xf32> to vector<4x8x1xf32>
    %82 = vector.broadcast %81 : vector<4x8x1xf32> to vector<4x8x8xf32>
    %83 = arith.subf %79, %82 : vector<4x8x8xf32>
    %84 = math.exp %83 : vector<4x8x8xf32>
    %cst_44 = arith.constant dense<0.000000e+00> : vector<4x8xf32>
    %85 = vector.multi_reduction <add>, %84, %cst_44 [2] : vector<4x8x8xf32> to vector<4x8xf32>
    %86 = vector.shape_cast %85 : vector<4x8xf32> to vector<4x8x1xf32>
    %87 = tpu.reciprocal %86 {approx = true} : vector<4x8x1xf32> -> vector<4x8x1xf32>
    %88 = arith.mulf %86, %87 : vector<4x8x1xf32>
    %cst_45 = arith.constant 2.000000e+00 : f32
    %89 = vector.broadcast %cst_45 : f32 to vector<4x8x1xf32>
    %90 = arith.subf %89, %88 : vector<4x8x1xf32>
    %91 = arith.mulf %87, %90 : vector<4x8x1xf32>
    %92 = vector.broadcast %91 : vector<4x8x1xf32> to vector<4x8x8xf32>
    %93 = arith.mulf %84, %92 : vector<4x8x8xf32>
    "tpu.trace_start"() <{level = 10 : i32, message = "hls,hse->hle"}> : () -> ()
    %cst_46 = arith.constant dense<0.000000e+00> : vector<4x8x8xf32>
    %94 = tpu.matmul %93, %3, %cst_46 {dimension_numbers = #tpu.dot_dimension_numbers<[2], [1], [1], [2], [0, 0, 0, 1, 1, 2], [0], [0]>} : vector<4x8x8xf32>, vector<4x8x8xf32>, vector<4x8x8xf32> -> vector<4x8x8xf32>
    "tpu.trace_stop"() : () -> ()
    %95 = arith.addf %76, %94 : vector<4x8x8xf32>
    %cst_47 = arith.constant dense<0.000000e+00> : vector<4x8xf32>
    %96 = vector.multi_reduction <add>, %95, %cst_47 [2] : vector<4x8x8xf32> to vector<4x8xf32>
    %97 = vector.shape_cast %96 : vector<4x8xf32> to vector<4x8x1xf32>
    %98 = vector.extract_strided_slice %97 {offsets = [0, 0, 0], sizes = [1, 8, 1], strides = [1, 1, 1]} : vector<4x8x1xf32> to vector<1x8x1xf32>
    %99 = vector.shape_cast %98 : vector<1x8x1xf32> to vector<8x1xf32>
    %100 = vector.extract_strided_slice %97 {offsets = [1, 0, 0], sizes = [1, 8, 1], strides = [1, 1, 1]} : vector<4x8x1xf32> to vector<1x8x1xf32>
    %101 = vector.shape_cast %100 : vector<1x8x1xf32> to vector<8x1xf32>
    %102 = arith.addf %99, %101 : vector<8x1xf32>
    %103 = vector.extract_strided_slice %97 {offsets = [2, 0, 0], sizes = [1, 8, 1], strides = [1, 1, 1]} : vector<4x8x1xf32> to vector<1x8x1xf32>
    %104 = vector.shape_cast %103 : vector<1x8x1xf32> to vector<8x1xf32>
    %105 = arith.addf %102, %104 : vector<8x1xf32>
    %106 = vector.extract_strided_slice %97 {offsets = [3, 0, 0], sizes = [1, 8, 1], strides = [1, 1, 1]} : vector<4x8x1xf32> to vector<1x8x1xf32>
    %107 = vector.shape_cast %106 : vector<1x8x1xf32> to vector<8x1xf32>
    %108 = arith.addf %105, %107 : vector<8x1xf32>
    %cst_48 = arith.constant 3.125000e-02 : f32
    %109 = vector.broadcast %cst_48 : f32 to vector<8x1xf32>
    %110 = arith.mulf %108, %109 : vector<8x1xf32>
    %111 = vector.shape_cast %110 : vector<8x1xf32> to vector<1x8x1xf32>
    %112 = vector.broadcast %111 : vector<1x8x1xf32> to vector<4x8x8xf32>
    %113 = arith.subf %95, %112 : vector<4x8x8xf32>
    %114 = arith.mulf %113, %113 : vector<4x8x8xf32>
    %cst_49 = arith.constant dense<0.000000e+00> : vector<4x8xf32>
    %115 = vector.multi_reduction <add>, %114, %cst_49 [2] : vector<4x8x8xf32> to vector<4x8xf32>
    %116 = vector.shape_cast %115 : vector<4x8xf32> to vector<4x8x1xf32>
    %117 = vector.extract_strided_slice %116 {offsets = [0, 0, 0], sizes = [1, 8, 1], strides = [1, 1, 1]} : vector<4x8x1xf32> to vector<1x8x1xf32>
    %118 = vector.shape_cast %117 : vector<1x8x1xf32> to vector<8x1xf32>
    %119 = vector.extract_strided_slice %116 {offsets = [1, 0, 0], sizes = [1, 8, 1], strides = [1, 1, 1]} : vector<4x8x1xf32> to vector<1x8x1xf32>
    %120 = vector.shape_cast %119 : vector<1x8x1xf32> to vector<8x1xf32>
    %121 = arith.addf %118, %120 : vector<8x1xf32>
    %122 = vector.extract_strided_slice %116 {offsets = [2, 0, 0], sizes = [1, 8, 1], strides = [1, 1, 1]} : vector<4x8x1xf32> to vector<1x8x1xf32>
    %123 = vector.shape_cast %122 : vector<1x8x1xf32> to vector<8x1xf32>
    %124 = arith.addf %121, %123 : vector<8x1xf32>
    %125 = vector.extract_strided_slice %116 {offsets = [3, 0, 0], sizes = [1, 8, 1], strides = [1, 1, 1]} : vector<4x8x1xf32> to vector<1x8x1xf32>
    %126 = vector.shape_cast %125 : vector<1x8x1xf32> to vector<8x1xf32>
    %127 = arith.addf %124, %126 : vector<8x1xf32>
    %cst_50 = arith.constant 3.125000e-02 : f32
    %128 = vector.broadcast %cst_50 : f32 to vector<8x1xf32>
    %129 = arith.mulf %127, %128 : vector<8x1xf32>
    %cst_51 = arith.constant 9.99999974E-6 : f32
    %130 = vector.broadcast %cst_51 : f32 to vector<8x1xf32>
    %131 = arith.addf %129, %130 : vector<8x1xf32>
    %132 = math.rsqrt %131 : vector<8x1xf32>
    %133 = vector.shape_cast %132 : vector<8x1xf32> to vector<1x8x1xf32>
    %134 = vector.broadcast %133 : vector<1x8x1xf32> to vector<4x8x8xf32>
    %135 = arith.mulf %113, %134 : vector<4x8x8xf32>
    %136 = vector.broadcast %6 : vector<4x1x8xf32> to vector<4x8x8xf32>
    %137 = arith.mulf %135, %136 : vector<4x8x8xf32>
    %138 = vector.broadcast %7 : vector<4x1x8xf32> to vector<4x8x8xf32>
    %139 = arith.addf %137, %138 : vector<4x8x8xf32>
    %140 = vector.extract_strided_slice %139 {offsets = [0, 0, 0], sizes = [1, 8, 8], strides = [1, 1, 1]} : vector<4x8x8xf32> to vector<1x8x8xf32>
    %141 = vector.shape_cast %140 : vector<1x8x8xf32> to vector<8x8xf32>
    %142 = vector.extract_strided_slice %139 {offsets = [1, 0, 0], sizes = [1, 8, 8], strides = [1, 1, 1]} : vector<4x8x8xf32> to vector<1x8x8xf32>
    %143 = vector.shape_cast %142 : vector<1x8x8xf32> to vector<8x8xf32>
    %144 = vector.extract_strided_slice %139 {offsets = [2, 0, 0], sizes = [1, 8, 8], strides = [1, 1, 1]} : vector<4x8x8xf32> to vector<1x8x8xf32>
    %145 = vector.shape_cast %144 : vector<1x8x8xf32> to vector<8x8xf32>
    %146 = vector.extract_strided_slice %139 {offsets = [3, 0, 0], sizes = [1, 8, 8], strides = [1, 1, 1]} : vector<4x8x8xf32> to vector<1x8x8xf32>
    %147 = vector.shape_cast %146 : vector<1x8x8xf32> to vector<8x8xf32>
    %148 = tpu.concatenate %141, %143, %145, %147 in 1 : vector<8x8xf32>, vector<8x8xf32>, vector<8x8xf32>, vector<8x8xf32> -> vector<8x32xf32>
    %cst_52 = arith.constant dense<0.000000e+00> : vector<8x128xf32>
    %149 = tpu.matmul %148, %10, %cst_52 {dimension_numbers = #tpu.dot_dimension_numbers<[1], [0], [0], [1], [0, 0, 1, 1], [], []>} : vector<8x32xf32>, vector<32x128xf32>, vector<8x128xf32> -> vector<8x128xf32>
    %150 = vector.broadcast %11 : vector<1x128xf32> to vector<8x128xf32>
    %151 = arith.addf %149, %150 : vector<8x128xf32>
    %cst_53 = arith.constant 0.000000e+00 : f32
    %152 = vector.broadcast %cst_53 : f32 to vector<8x128xf32>
    %153 = arith.maximumf %151, %152 : vector<8x128xf32>
    %cst_54 = arith.constant dense<0.000000e+00> : vector<8x32xf32>
    %154 = tpu.matmul %153, %12, %cst_54 {dimension_numbers = #tpu.dot_dimension_numbers<[1], [0], [0], [1], [0, 0, 1, 1], [], []>} : vector<8x128xf32>, vector<128x32xf32>, vector<8x32xf32> -> vector<8x32xf32>
    %155 = vector.broadcast %13 : vector<1x32xf32> to vector<8x32xf32>
    %156 = arith.addf %154, %155 : vector<8x32xf32>
    %157 = arith.addf %148, %156 : vector<8x32xf32>
    %cst_55 = arith.constant dense<0.000000e+00> : vector<8xf32>
    %158 = vector.multi_reduction <add>, %157, %cst_55 [1] : vector<8x32xf32> to vector<8xf32>
    %159 = vector.shape_cast %158 : vector<8xf32> to vector<8x1xf32>
    %cst_56 = arith.constant 3.200000e+01 : f32
    %160 = vector.broadcast %cst_56 : f32 to vector<8x1xf32>
    %161 = arith.divf %159, %160 : vector<8x1xf32>
    %162 = vector.broadcast %161 : vector<8x1xf32> to vector<8x32xf32>
    %163 = arith.subf %157, %162 : vector<8x32xf32>
    %164 = arith.mulf %163, %163 : vector<8x32xf32>
    %cst_57 = arith.constant dense<0.000000e+00> : vector<8xf32>
    %165 = vector.multi_reduction <add>, %164, %cst_57 [1] : vector<8x32xf32> to vector<8xf32>
    %166 = vector.shape_cast %165 : vector<8xf32> to vector<8x1xf32>
    %cst_58 = arith.constant 3.200000e+01 : f32
    %167 = vector.broadcast %cst_58 : f32 to vector<8x1xf32>
    %168 = arith.divf %166, %167 : vector<8x1xf32>
    %169 = vector.broadcast %161 : vector<8x1xf32> to vector<8x32xf32>
    %170 = arith.subf %157, %169 : vector<8x32xf32>
    %cst_59 = arith.constant 9.99999974E-6 : f32
    %171 = vector.broadcast %cst_59 : f32 to vector<8x1xf32>
    %172 = arith.addf %168, %171 : vector<8x1xf32>
    %173 = math.rsqrt %172 : vector<8x1xf32>
    %174 = vector.broadcast %173 : vector<8x1xf32> to vector<8x32xf32>
    %175 = arith.mulf %170, %174 : vector<8x32xf32>
    %176 = vector.broadcast %8 : vector<1x32xf32> to vector<8x32xf32>
    %177 = arith.mulf %175, %176 : vector<8x32xf32>
    %178 = vector.broadcast %9 : vector<1x32xf32> to vector<8x32xf32>
    %179 = arith.addf %177, %178 : vector<8x32xf32>
    %c0_60 = arith.constant 0 : index
    %c0_61 = arith.constant 0 : index
    %c0_62 = arith.constant 0 : index
    %180 = vector.load %arg13[%c0_60, %c0_61, %c0_62] : memref<1x8x32xf32, #tpu.memory_space<vmem>>, vector<1x8x32xf32>
    %181 = vector.shape_cast %180 : vector<1x8x32xf32> to vector<8x32xf32>
    %182 = vector.shape_cast %179 : vector<8x32xf32> to vector<1x8x32xf32>
    tpu.vector_store %arg13[%c0_60, %c0_61, %c0_62], %182 {strides = array<i32>} : memref<1x8x32xf32, #tpu.memory_space<vmem>>, vector<1x8x32xf32>,
    return
  }
  func.func @transform_0(%arg0: i32) -> (i32, i32, i32, i32) {
    %c0_i32 = arith.constant 0 : i32
    %c0_i32_0 = arith.constant 0 : i32
    %c0_i32_1 = arith.constant 0 : i32
    %c0_i32_2 = arith.constant 0 : i32
    return %arg0, %c0_i32, %c0_i32_0, %c0_i32_1 : i32, i32, i32, i32
  }
  func.func @transform_1(%arg0: i32) -> (i32, i32, i32, i32) {
    %c0_i32 = arith.constant 0 : i32
    %c0_i32_0 = arith.constant 0 : i32
    %c0_i32_1 = arith.constant 0 : i32
    %c0_i32_2 = arith.constant 0 : i32
    return %arg0, %c0_i32, %c0_i32_0, %c0_i32_1 : i32, i32, i32, i32
  }
  func.func @transform_2(%arg0: i32) -> (i32, i32, i32) {
    %c0_i32 = arith.constant 0 : i32
    %c0_i32_0 = arith.constant 0 : i32
    %c0_i32_1 = arith.constant 0 : i32
    %c0_i32_2 = arith.constant 0 : i32
    return %c0_i32, %c0_i32_0, %c0_i32_1 : i32, i32, i32
  }
  func.func @transform_3(%arg0: i32) -> (i32, i32, i32) {
    %c0_i32 = arith.constant 0 : i32
    %c0_i32_0 = arith.constant 0 : i32
    %c0_i32_1 = arith.constant 0 : i32
    %c0_i32_2 = arith.constant 0 : i32
    return %c0_i32, %c0_i32_0, %c0_i32_1 : i32, i32, i32
  }
  func.func @transform_4(%arg0: i32) -> (i32, i32, i32) {
    %c0_i32 = arith.constant 0 : i32
    %c0_i32_0 = arith.constant 0 : i32
    %c0_i32_1 = arith.constant 0 : i32
    %c0_i32_2 = arith.constant 0 : i32
    return %c0_i32, %c0_i32_0, %c0_i32_1 : i32, i32, i32
  }
  func.func @transform_5(%arg0: i32) -> (i32, i32, i32) {
    %c0_i32 = arith.constant 0 : i32
    %c0_i32_0 = arith.constant 0 : i32
    %c0_i32_1 = arith.constant 0 : i32
    %c0_i32_2 = arith.constant 0 : i32
    return %c0_i32, %c0_i32_0, %c0_i32_1 : i32, i32, i32
  }
  func.func @transform_6(%arg0: i32) -> (i32, i32) {
    %c0_i32 = arith.constant 0 : i32
    %c0_i32_0 = arith.constant 0 : i32
    %c0_i32_1 = arith.constant 0 : i32
    return %c0_i32, %c0_i32_0 : i32, i32
  }
  func.func @transform_7(%arg0: i32) -> (i32, i32) {
    %c0_i32 = arith.constant 0 : i32
    %c0_i32_0 = arith.constant 0 : i32
    %c0_i32_1 = arith.constant 0 : i32
    return %c0_i32, %c0_i32_0 : i32, i32
  }
  func.func @transform_8(%arg0: i32) -> (i32, i32) {
    %c0_i32 = arith.constant 0 : i32
    %c0_i32_0 = arith.constant 0 : i32
    %c0_i32_1 = arith.constant 0 : i32
    return %c0_i32, %c0_i32_0 : i32, i32
  }
  func.func @transform_9(%arg0: i32) -> (i32, i32) {
    %c0_i32 = arith.constant 0 : i32
    %c0_i32_0 = arith.constant 0 : i32
    %c0_i32_1 = arith.constant 0 : i32
    return %c0_i32, %c0_i32_0 : i32, i32
  }
  func.func @transform_10(%arg0: i32) -> (i32, i32) {
    %c0_i32 = arith.constant 0 : i32
    %c0_i32_0 = arith.constant 0 : i32
    %c0_i32_1 = arith.constant 0 : i32
    return %c0_i32, %c0_i32_0 : i32, i32
  }
  func.func @transform_11(%arg0: i32) -> (i32, i32) {
    %c0_i32 = arith.constant 0 : i32
    %c0_i32_0 = arith.constant 0 : i32
    %c0_i32_1 = arith.constant 0 : i32
    return %c0_i32, %c0_i32_0 : i32, i32
  }
  func.func @transform_12(%arg0: i32) -> (i32, i32, i32) {
    %c0_i32 = arith.constant 0 : i32
    %c0_i32_0 = arith.constant 0 : i32
    %c0_i32_1 = arith.constant 0 : i32
    return %arg0, %c0_i32, %c0_i32_0 : i32, i32, i32
  }
}

</mosaic_0001>

<llo_original>
// kernel: tpu_custom_call.1
$region0: #{tpu_custom_call.1}
  #allocation0 [shape = 'u32[]', space=smem, size = 0x4, offset = 0x4, fixed_abs, tag = 'smem constant byte address 0x4 - core index']
  #allocation1 [shape = 'u32[72,128]{1,0:T(1,128)}', space=vmem, size = 0x9000, scoped, tag = 'internal scratch']
  %s0 = inlined_call_operand.vmem [shape: f32[2,4,8,8], index: 0, kind: input, shape index: {}]
  %s1 = inlined_call_operand.vmem [shape: f32[2,4,8,8], index: 1, kind: input, shape index: {}]
  %s2 = inlined_call_operand.hbm [shape: f32[4,1,8], index: 2, kind: input, shape index: {}]
  %s3 = inlined_call_operand.hbm [shape: f32[4,1,8], index: 3, kind: input, shape index: {}]
  %s4 = inlined_call_operand.hbm [shape: f32[4,1,8], index: 4, kind: input, shape index: {}]
  %s5 = inlined_call_operand.hbm [shape: f32[4,1,8], index: 5, kind: input, shape index: {}]
  %s6 = inlined_call_operand.vmem [shape: f32[1,32], index: 6, kind: input, shape index: {}]
  %s7 = inlined_call_operand.vmem [shape: f32[1,32], index: 7, kind: input, shape index: {}]
  %s8 = inlined_call_operand.vmem [shape: f32[32,128], index: 8, kind: input, shape index: {}]
  %s9 = inlined_call_operand.vmem [shape: f32[1,128], index: 9, kind: input, shape index: {}]
  %s10 = inlined_call_operand.vmem [shape: f32[128,32], index: 10, kind: input, shape index: {}]
  %s11 = inlined_call_operand.vmem [shape: f32[1,32], index: 11, kind: input, shape index: {}]
  %s12 = inlined_call_operand.hbm [shape: f32[2,8,32], index: 12, kind: output, shape index: {}]
  %s13 = sld [smem:[#allocation0]]
  $region97: #{tpu_custom_call.1} parent=0
    _
  %s15 = ssub.s32 1, %s13
  %s16 = scalar_select 0, %s15, %s13
  $region1: #{tpu_custom_call.1} parent=0
    #allocation2 [shape = 'u8[2048]{0}', space=vmem, size = 0x800, scoped, tag = 'input window, operand 2, single buffered']
    #allocation3 [shape = 's32[2]{0}', space=sflag, size = 0x8, scoped, tag = 'scoped memory for tpu_custom_call.1']
    #allocation4 [shape = 's32[2]{0}', space=sflag, size = 0x8, scoped, tag = 'scoped memory for tpu_custom_call.1']
    #allocation5 [shape = 'u8[2048]{0}', space=vmem, size = 0x800, scoped, tag = 'input window, operand 3, single buffered']
    #allocation6 [shape = 's32[1]{0}', space=sflag, size = 0x4, scoped, tag = 'scoped memory for tpu_custom_call.1']
    #allocation7 [shape = 'u8[2048]{0}', space=vmem, size = 0x800, scoped, tag = 'input window, operand 4, single buffered']
    #allocation8 [shape = 'u8[2048]{0}', space=vmem, size = 0x800, scoped, tag = 'input window, operand 5, single buffered']
    #allocation9 [shape = 's32[1]{0}', space=sflag, size = 0x4, scoped, tag = 'scoped memory for tpu_custom_call.1']
    #allocation10 [shape = 'u8[8192]{0}', space=vmem, size = 0x2000, scoped, tag = 'output window, operand 0']
    %17 = vsyncpa [#allocation3], 0
    %18 = vsyncpa [#allocation6], 0
    %19 = vsyncpa [#allocation9], 0
    %20 = vsyncpa [#allocation4], 0
    %s21 = scalar_lea.sflag [#allocation4], 1
    %22 = vsyncpa %s21, 0
    loop: start=0, step=1, limit=4
    $region2: #{tpu_custom_call.1} parent=1 // loop_pre_header
      _
    $region3: #{tpu_custom_call.1} parent=1 // loop_header
      %s24 = sphi 0, %s28
      %p25 = scmp.ge.s32.totalorder %s24, 4
      %s34 = sphi 0, %s36
      %s37 = sphi 0, %s34
      %s38 = sphi 0, %s37
      %s54 = sphi 0, %s38
      %s60 = sphi 0, %s62
      %s63 = sphi 0, %s60
      %s64 = sphi 0, %s63
      %s80 = sphi 0, %s64
      %s84 = sphi 0, %s84
      %s86 = sphi 0, %s84
      %s87 = sphi 0, %s86
      %s101 = sphi 0, %s87
      %s105 = sphi 0, %s105
      %s107 = sphi 0, %s105
      %s108 = sphi 0, %s107
      %s122 = sphi 0, %s108
      %s126 = sphi 0, %s126
      %s128 = sphi 0, %s126
      %s129 = sphi 0, %s128
      %s143 = sphi 0, %s129
      %s147 = sphi 0, %s147
      %s149 = sphi 0, %s147
      %s150 = sphi 0, %s149
      %s164 = sphi 0, %s150
      %s168 = sphi 0, %s168
      %s170 = sphi 0, %s168
      %s171 = sphi 0, %s170
      %s185 = sphi 0, %s171
      %s189 = sphi 0, %s189
      %s191 = sphi 0, %s189
      %s192 = sphi 0, %s191
      %s206 = sphi 0, %s192
      %s210 = sphi 0, %s210
      %s212 = sphi 0, %s210
      %s213 = sphi 0, %s212
      %s227 = sphi 0, %s213
      %s231 = sphi 0, %s231
      %s233 = sphi 0, %s231
      %s234 = sphi 0, %s233
      %s248 = sphi 0, %s234
      %s252 = sphi 0, %s252
      %s254 = sphi 0, %s252
      %s255 = sphi 0, %s254
      %s269 = sphi 0, %s255
      %s273 = sphi 0, %s273
      %s275 = sphi 0, %s273
      %s276 = sphi 0, %s275
      %s290 = sphi 0, %s276
      %s296 = sphi 0, %s298
      %s299 = sphi 0, %s296
      %s300 = sphi 0, %s299
      %s316 = sphi 0, %s300
    $region4: #{tpu_custom_call.1} parent=1 // loop_header_branch
      %27 = sbr.rel (%p25) target = $region8
    $region5: #{tpu_custom_call.1} parent=1 // loop_body
      %s29 = ssub.s32 %s24, 1
      %s30 = ssub.s32 %s24, 2
      %s31 = sadd.s32 %s24, 1
      %s32 = ssub.s32 %s24, %s31
      %p33 = scmp.eq.s32.totalorder %s32, 0
      %s35 = sadd.s32 %s34, 1
      %s36 = scalar_select %p33, %s34, %s35
      %p39 = pneg %p33
      %p40 = scmp.eq.s32.totalorder %s24, 1
      %p41 = por %p39, %p40
      %p42 = scmp.ne.s32.totalorder %s34, %s37
      %p43 = scmp.eq.s32.totalorder %s24, 0
      %p44 = por %p42, %p43
      %p45 = scmp.ne.s32.totalorder %s34, %s37
      %p46 = scmp.eq.s32.totalorder %s29, 1
      %p47 = por %p45, %p46
      %p48 = scmp.ne.s32.totalorder %s37, %s38
      %p49 = scmp.eq.s32.totalorder %s29, 0
      %p50 = por %p48, %p49
      %p51 = scmp.ne.s32.totalorder %s37, %s38
      %p52 = scmp.eq.s32.totalorder %s30, 1
      %p53 = por %p51, %p52
      %p55 = scmp.ne.s32.totalorder %s38, %s54
      %p56 = scmp.eq.s32.totalorder %s30, 0
      %p57 = por %p55, %p56
      %s58 = ssub.s32 %s24, %s31
      %p59 = scmp.eq.s32.totalorder %s58, 0
      %s61 = sadd.s32 %s60, 1
      %s62 = scalar_select %p59, %s60, %s61
      %p65 = pneg %p59
      %p66 = scmp.eq.s32.totalorder %s24, 1
      %p67 = por %p65, %p66
      %p68 = scmp.ne.s32.totalorder %s60, %s63
      %p69 = scmp.eq.s32.totalorder %s24, 0
      %p70 = por %p68, %p69
      %p71 = scmp.ne.s32.totalorder %s60, %s63
      %p72 = scmp.eq.s32.totalorder %s29, 1
      %p73 = por %p71, %p72
      %p74 = scmp.ne.s32.totalorder %s63, %s64
      %p75 = scmp.eq.s32.totalorder %s29, 0
      %p76 = por %p74, %p75
      %p77 = scmp.ne.s32.totalorder %s63, %s64
      %p78 = scmp.eq.s32.totalorder %s30, 1
      %p79 = por %p77, %p78
      %p81 = scmp.ne.s32.totalorder %s64, %s80
      %p82 = scmp.eq.s32.totalorder %s30, 0
      %p83 = por %p81, %p82
      %s85 = sadd.s32 %s84, 1
      %p88 = scmp.eq.s32.totalorder %s24, 1
      %p89 = scmp.ne.s32.totalorder %s84, %s86
      %p90 = scmp.eq.s32.totalorder %s24, 0
      %p91 = por %p89, %p90
      %p92 = scmp.ne.s32.totalorder %s84, %s86
      %p93 = scmp.eq.s32.totalorder %s29, 1
      %p94 = por %p92, %p93
      %p95 = scmp.ne.s32.totalorder %s86, %s87
      %p96 = scmp.eq.s32.totalorder %s29, 0
      %p97 = por %p95, %p96
      %p98 = scmp.ne.s32.totalorder %s86, %s87
      %p99 = scmp.eq.s32.totalorder %s30, 1
      %p100 = por %p98, %p99
      %p102 = scmp.ne.s32.totalorder %s87, %s101
      %p103 = scmp.eq.s32.totalorder %s30, 0
      %p104 = por %p102, %p103
      %s106 = sadd.s32 %s105, 1
      %p109 = scmp.eq.s32.totalorder %s24, 1
      %p110 = scmp.ne.s32.totalorder %s105, %s107
      %p111 = scmp.eq.s32.totalorder %s24, 0
      %p112 = por %p110, %p111
      %p113 = scmp.ne.s32.totalorder %s105, %s107
      %p114 = scmp.eq.s32.totalorder %s29, 1
      %p115 = por %p113, %p114
      %p116 = scmp.ne.s32.totalorder %s107, %s108
      %p117 = scmp.eq.s32.totalorder %s29, 0
      %p118 = por %p116, %p117
      %p119 = scmp.ne.s32.totalorder %s107, %s108
      %p120 = scmp.eq.s32.totalorder %s30, 1
      %p121 = por %p119, %p120
      %p123 = scmp.ne.s32.totalorder %s108, %s122
      %p124 = scmp.eq.s32.totalorder %s30, 0
      %p125 = por %p123, %p124
      %s127 = sadd.s32 %s126, 1
      %p130 = scmp.eq.s32.totalorder %s24, 1
      %p131 = scmp.ne.s32.totalorder %s126, %s128
      %p132 = scmp.eq.s32.totalorder %s24, 0
      %p133 = por %p131, %p132
      %p134 = scmp.ne.s32.totalorder %s126, %s128
      %p135 = scmp.eq.s32.totalorder %s29, 1
      %p136 = por %p134, %p135
      %p137 = scmp.ne.s32.totalorder %s128, %s129
      %p138 = scmp.eq.s32.totalorder %s29, 0
      %p139 = por %p137, %p138
      %p140 = scmp.ne.s32.totalorder %s128, %s129
      %p141 = scmp.eq.s32.totalorder %s30, 1
      %p142 = por %p140, %p141
      %p144 = scmp.ne.s32.totalorder %s129, %s143
      %p145 = scmp.eq.s32.totalorder %s30, 0
      %p146 = por %p144, %p145
      %s148 = sadd.s32 %s147, 1
      %p151 = scmp.eq.s32.totalorder %s24, 1
      %p152 = scmp.ne.s32.totalorder %s147, %s149
      %p153 = scmp.eq.s32.totalorder %s24, 0
      %p154 = por %p152, %p153
      %p155 = scmp.ne.s32.totalorder %s147, %s149
      %p156 = scmp.eq.s32.totalorder %s29, 1
      %p157 = por %p155, %p156
      %p158 = scmp.ne.s32.totalorder %s149, %s150
      %p159 = scmp.eq.s32.totalorder %s29, 0
      %p160 = por %p158, %p159
      %p161 = scmp.ne.s32.totalorder %s149, %s150
      %p162 = scmp.eq.s32.totalorder %s30, 1
      %p163 = por %p161, %p162
      %p165 = scmp.ne.s32.totalorder %s150, %s164
      %p166 = scmp.eq.s32.totalorder %s30, 0
      %p167 = por %p165, %p166
      %s169 = sadd.s32 %s168, 1
      %p172 = scmp.eq.s32.totalorder %s24, 1
      %p173 = scmp.ne.s32.totalorder %s168, %s170
      %p174 = scmp.eq.s32.totalorder %s24, 0
      %p175 = por %p173, %p174
      %p176 = scmp.ne.s32.totalorder %s168, %s170
      %p177 = scmp.eq.s32.totalorder %s29, 1
      %p178 = por %p176, %p177
      %p179 = scmp.ne.s32.totalorder %s170, %s171
      %p180 = scmp.eq.s32.totalorder %s29, 0
      %p181 = por %p179, %p180
      %p182 = scmp.ne.s32.totalorder %s170, %s171
      %p183 = scmp.eq.s32.totalorder %s30, 1
      %p184 = por %p182, %p183
      %p186 = scmp.ne.s32.totalorder %s171, %s185
      %p187 = scmp.eq.s32.totalorder %s30, 0
      %p188 = por %p186, %p187
      %s190 = sadd.s32 %s189, 1
      %p193 = scmp.eq.s32.totalorder %s24, 1
      %p194 = scmp.ne.s32.totalorder %s189, %s191
      %p195 = scmp.eq.s32.totalorder %s24, 0
      %p196 = por %p194, %p195
      %p197 = scmp.ne.s32.totalorder %s189, %s191
      %p198 = scmp.eq.s32.totalorder %s29, 1
      %p199 = por %p197, %p198
      %p200 = scmp.ne.s32.totalorder %s191, %s192
      %p201 = scmp.eq.s32.totalorder %s29, 0
      %p202 = por %p200, %p201
      %p203 = scmp.ne.s32.totalorder %s191, %s192
      %p204 = scmp.eq.s32.totalorder %s30, 1
      %p205 = por %p203, %p204
      %p207 = scmp.ne.s32.totalorder %s192, %s206
      %p208 = scmp.eq.s32.totalorder %s30, 0
      %p209 = por %p207, %p208
      %s211 = sadd.s32 %s210, 1
      %p214 = scmp.eq.s32.totalorder %s24, 1
      %p215 = scmp.ne.s32.totalorder %s210, %s212
      %p216 = scmp.eq.s32.totalorder %s24, 0
      %p217 = por %p215, %p216
      %p218 = scmp.ne.s32.totalorder %s210, %s212
      %p219 = scmp.eq.s32.totalorder %s29, 1
      %p220 = por %p218, %p219
      %p221 = scmp.ne.s32.totalorder %s212, %s213
      %p222 = scmp.eq.s32.totalorder %s29, 0
      %p223 = por %p221, %p222
      %p224 = scmp.ne.s32.totalorder %s212, %s213
      %p225 = scmp.eq.s32.totalorder %s30, 1
      %p226 = por %p224, %p225
      %p228 = scmp.ne.s32.totalorder %s213, %s227
      %p229 = scmp.eq.s32.totalorder %s30, 0
      %p230 = por %p228, %p229
      %s232 = sadd.s32 %s231, 1
      %p235 = scmp.eq.s32.totalorder %s24, 1
      %p236 = scmp.ne.s32.totalorder %s231, %s233
      %p237 = scmp.eq.s32.totalorder %s24, 0
      %p238 = por %p236, %p237
      %p239 = scmp.ne.s32.totalorder %s231, %s233
      %p240 = scmp.eq.s32.totalorder %s29, 1
      %p241 = por %p239, %p240
      %p242 = scmp.ne.s32.totalorder %s233, %s234
      %p243 = scmp.eq.s32.totalorder %s29, 0
      %p244 = por %p242, %p243
      %p245 = scmp.ne.s32.totalorder %s233, %s234
      %p246 = scmp.eq.s32.totalorder %s30, 1
      %p247 = por %p245, %p246
      %p249 = scmp.ne.s32.totalorder %s234, %s248
      %p250 = scmp.eq.s32.totalorder %s30, 0
      %p251 = por %p249, %p250
      %s253 = sadd.s32 %s252, 1
      %p256 = scmp.eq.s32.totalorder %s24, 1
      %p257 = scmp.ne.s32.totalorder %s252, %s254
      %p258 = scmp.eq.s32.totalorder %s24, 0
      %p259 = por %p257, %p258
      %p260 = scmp.ne.s32.totalorder %s252, %s254
      %p261 = scmp.eq.s32.totalorder %s29, 1
      %p262 = por %p260, %p261
      %p263 = scmp.ne.s32.totalorder %s254, %s255
      %p264 = scmp.eq.s32.totalorder %s29, 0
      %p265 = por %p263, %p264
      %p266 = scmp.ne.s32.totalorder %s254, %s255
      %p267 = scmp.eq.s32.totalorder %s30, 1
      %p268 = por %p266, %p267
      %p270 = scmp.ne.s32.totalorder %s255, %s269
      %p271 = scmp.eq.s32.totalorder %s30, 0
      %p272 = por %p270, %p271
      %s274 = sadd.s32 %s273, 1
      %p277 = scmp.eq.s32.totalorder %s24, 1
      %p278 = scmp.ne.s32.totalorder %s273, %s275
      %p279 = scmp.eq.s32.totalorder %s24, 0
      %p280 = por %p278, %p279
      %p281 = scmp.ne.s32.totalorder %s273, %s275
      %p282 = scmp.eq.s32.totalorder %s29, 1
      %p283 = por %p281, %p282
      %p284 = scmp.ne.s32.totalorder %s275, %s276
      %p285 = scmp.eq.s32.totalorder %s29, 0
      %p286 = por %p284, %p285
      %p287 = scmp.ne.s32.totalorder %s275, %s276
      %p288 = scmp.eq.s32.totalorder %s30, 1
      %p289 = por %p287, %p288
      %p291 = scmp.ne.s32.totalorder %s276, %s290
      %p292 = scmp.eq.s32.totalorder %s30, 0
      %p293 = por %p291, %p292
      %s294 = ssub.s32 %s24, %s31
      %p295 = scmp.eq.s32.totalorder %s294, 0
      %s297 = sadd.s32 %s296, 1
      %s298 = scalar_select %p295, %s296, %s297
      %p301 = pneg %p295
      %p302 = scmp.eq.s32.totalorder %s24, 1
      %p303 = por %p301, %p302
      %p304 = scmp.ne.s32.totalorder %s296, %s299
      %p305 = scmp.eq.s32.totalorder %s24, 0
      %p306 = por %p304, %p305
      %p307 = scmp.ne.s32.totalorder %s296, %s299
      %p308 = scmp.eq.s32.totalorder %s29, 1
      %p309 = por %p307, %p308
      %p310 = scmp.ne.s32.totalorder %s299, %s300
      %p311 = scmp.eq.s32.totalorder %s29, 0
      %p312 = por %p310, %p311
      %p313 = scmp.ne.s32.totalorder %s299, %s300
      %p314 = scmp.eq.s32.totalorder %s30, 1
      %p315 = por %p313, %p314
      %p317 = scmp.ne.s32.totalorder %s300, %s316
      %p318 = scmp.eq.s32.totalorder %s30, 0
      %p319 = por %p317, %p318
      %p320 = scmp.le.s32.totalorder 1, %s24
      %p321 = scmp.lt.s32.totalorder %s24, 3
      %p322 = pnand %p320, %p321
      %p323 = pneg %p322
      // Predicated region
      $region9: #{tpu_custom_call.1} parent=5 // pred_check
        _
      $region10: #{tpu_custom_call.1} parent=5 // pred_check_branch
        %325 = sbr.rel (%p322) target = $region12
      $region11: #{tpu_custom_call.1} parent=5 // pred_region
        %s326 = ssub.s32 %s24, 1
        // Predicated region
        $region13: #{tpu_custom_call.1} parent=11 // pred_check
          %p327 = pneg %p97
        $region14: #{tpu_custom_call.1} parent=11 // pred_check_branch
          %329 = sbr.rel (%p327) target = $region16
        $region15: #{tpu_custom_call.1} parent=11 // pred_region
          %331 = vsyncadd [#allocation3], 0
          %s332 = sshll.u32 %s2, 4
          %s333 = int_to_ptr.hbm [resolvable:$true] %s332
          %s334 = sshll.u32 [#allocation2], 4
          %s335 = int_to_ptr.vmem [resolvable:$true] %s334
          %340 = dma.hbm_to_vmem [thread:$0]  %s333, 64, %s335, [#allocation3], 16, 16, 1
        $region16: #{tpu_custom_call.1} parent=11 // pred_fallthru
          _
        // Predicated region
        $region17: #{tpu_custom_call.1} parent=11 // pred_check
          %p341 = pneg %p118
        $region18: #{tpu_custom_call.1} parent=11 // pred_check_branch
          %343 = sbr.rel (%p341) target = $region20
        $region19: #{tpu_custom_call.1} parent=11 // pred_region
          %345 = vsyncadd [#allocation6], 0
          %s346 = sshll.u32 %s3, 4
          %s347 = int_to_ptr.hbm [resolvable:$true] %s346
          %s348 = sshll.u32 [#allocation5], 4
          %s349 = int_to_ptr.vmem [resolvable:$true] %s348
          %354 = dma.hbm_to_vmem [thread:$0]  %s347, 64, %s349, [#allocation6], 16, 16, 1
        $region20: #{tpu_custom_call.1} parent=11 // pred_fallthru
          _
        // Predicated region
        $region21: #{tpu_custom_call.1} parent=11 // pred_check
          %p355 = pneg %p139
        $region22: #{tpu_custom_call.1} parent=11 // pred_check_branch
          %357 = sbr.rel (%p355) target = $region24
        $region23: #{tpu_custom_call.1} parent=11 // pred_region
          %359 = vsyncadd [#allocation6], 0
          %s360 = sshll.u32 %s4, 4
          %s361 = int_to_ptr.hbm [resolvable:$true] %s360
          %s362 = sshll.u32 [#allocation7], 4
          %s363 = int_to_ptr.vmem [resolvable:$true] %s362
          %368 = dma.hbm_to_vmem [thread:$0]  %s361, 64, %s363, [#allocation6], 16, 16, 1
        $region24: #{tpu_custom_call.1} parent=11 // pred_fallthru
          _
        // Predicated region
        $region25: #{tpu_custom_call.1} parent=11 // pred_check
          %p369 = pneg %p160
        $region26: #{tpu_custom_call.1} parent=11 // pred_check_branch
          %371 = sbr.rel (%p369) target = $region28
        $region27: #{tpu_custom_call.1} parent=11 // pred_region
          %373 = vsyncadd [#allocation9], 0
          %s374 = sshll.u32 %s5, 4
          %s375 = int_to_ptr.hbm [resolvable:$true] %s374
          %s376 = sshll.u32 [#allocation8], 4
          %s377 = int_to_ptr.vmem [resolvable:$true] %s376
          %382 = dma.hbm_to_vmem [thread:$0]  %s375, 64, %s377, [#allocation9], 16, 16, 1
        $region28: #{tpu_custom_call.1} parent=11 // pred_fallthru
          _
        // Predicated region
        $region29: #{tpu_custom_call.1} parent=11 // pred_check
          %p383 = pneg %p181
        $region30: #{tpu_custom_call.1} parent=11 // pred_check_branch
          %385 = sbr.rel (%p383) target = $region32
        $region31: #{tpu_custom_call.1} parent=11 // pred_region
          _
        $region32: #{tpu_custom_call.1} parent=11 // pred_fallthru
          _
        // Predicated region
        $region33: #{tpu_custom_call.1} parent=11 // pred_check
          %p386 = pneg %p202
        $region34: #{tpu_custom_call.1} parent=11 // pred_check_branch
          %388 = sbr.rel (%p386) target = $region36
        $region35: #{tpu_custom_call.1} parent=11 // pred_region
          _
        $region36: #{tpu_custom_call.1} parent=11 // pred_fallthru
          _
        // Predicated region
        $region37: #{tpu_custom_call.1} parent=11 // pred_check
          %p389 = pneg %p223
        $region38: #{tpu_custom_call.1} parent=11 // pred_check_branch
          %391 = sbr.rel (%p389) target = $region40
        $region39: #{tpu_custom_call.1} parent=11 // pred_region
          _
        $region40: #{tpu_custom_call.1} parent=11 // pred_fallthru
          _
        // Predicated region
        $region41: #{tpu_custom_call.1} parent=11 // pred_check
          %p392 = pneg %p244
        $region42: #{tpu_custom_call.1} parent=11 // pred_check_branch
          %394 = sbr.rel (%p392) target = $region44
        $region43: #{tpu_custom_call.1} parent=11 // pred_region
          _
        $region44: #{tpu_custom_call.1} parent=11 // pred_fallthru
          _
        // Predicated region
        $region45: #{tpu_custom_call.1} parent=11 // pred_check
          %p395 = pneg %p265
        $region46: #{tpu_custom_call.1} parent=11 // pred_check_branch
          %397 = sbr.rel (%p395) target = $region48
        $region47: #{tpu_custom_call.1} parent=11 // pred_region
          _
        $region48: #{tpu_custom_call.1} parent=11 // pred_fallthru
          _
        // Predicated region
        $region49: #{tpu_custom_call.1} parent=11 // pred_check
          %p398 = pneg %p286
        $region50: #{tpu_custom_call.1} parent=11 // pred_check_branch
          %400 = sbr.rel (%p398) target = $region52
        $region51: #{tpu_custom_call.1} parent=11 // pred_region
          _
        $region52: #{tpu_custom_call.1} parent=11 // pred_fallthru
          _
      $region12: #{tpu_custom_call.1} parent=5 // pred_fallthru
        _
      %p401 = scmp.lt.s32.totalorder %s24, 2
      // Predicated region
      $region53: #{tpu_custom_call.1} parent=5 // pred_check
        %p402 = pneg %p401
      $region54: #{tpu_custom_call.1} parent=5 // pred_check_branch
        %404 = sbr.rel (%p402) target = $region56
      $region55: #{tpu_custom_call.1} parent=5 // pred_region
        // Predicated region
        $region57: #{tpu_custom_call.1} parent=55 // pred_check
          %p405 = pneg %p44
        $region58: #{tpu_custom_call.1} parent=55 // pred_check_branch
          %407 = sbr.rel (%p405) target = $region60
        $region59: #{tpu_custom_call.1} parent=55 // pred_region
          %p408 = scmp.lt.s32.totalorder %s24, 1
          %s409 = scalar_select %p408, %s24, 1
          %s410 = smul.addr %s409, 4
          %s411 = smul.addr %s410, 8
          %s412 = scalar_lea.vmem %s0, %s411
        $region60: #{tpu_custom_call.1} parent=55 // pred_fallthru
          _
        // Predicated region
        $region61: #{tpu_custom_call.1} parent=55 // pred_check
          %p413 = pneg %p70
        $region62: #{tpu_custom_call.1} parent=55 // pred_check_branch
          %415 = sbr.rel (%p413) target = $region64
        $region63: #{tpu_custom_call.1} parent=55 // pred_region
          %p416 = scmp.lt.s32.totalorder %s24, 1
          %s417 = scalar_select %p416, %s24, 1
          %s418 = smul.addr %s417, 4
          %s419 = smul.addr %s418, 8
          %s420 = scalar_lea.vmem %s1, %s419
        $region64: #{tpu_custom_call.1} parent=55 // pred_fallthru
          _
      $region56: #{tpu_custom_call.1} parent=5 // pred_fallthru
        _
      %p421 = scmp.le.s32.totalorder 1, %s24
      %p422 = scmp.lt.s32.totalorder %s24, 3
      %p423 = pnand %p421, %p422
      %p424 = pneg %p423
      // Predicated region
      $region65: #{tpu_custom_call.1} parent=5 // pred_check
        _
      $region66: #{tpu_custom_call.1} parent=5 // pred_check_branch
        %426 = sbr.rel (%p423) target = $region68
      $region67: #{tpu_custom_call.1} parent=5 // pred_region
        %s427 = ssub.s32 %s24, 1
        // Predicated region
        $region69: #{tpu_custom_call.1} parent=67 // pred_check
          %p428 = pneg %p97
        $region70: #{tpu_custom_call.1} parent=67 // pred_check_branch
          %430 = sbr.rel (%p428) target = $region72
        $region71: #{tpu_custom_call.1} parent=67 // pred_region
          %432 = dma.done [#allocation3], 64
        $region72: #{tpu_custom_call.1} parent=67 // pred_fallthru
          _
        // Predicated region
        $region73: #{tpu_custom_call.1} parent=67 // pred_check
          %p433 = pneg %p118
        $region74: #{tpu_custom_call.1} parent=67 // pred_check_branch
          %435 = sbr.rel (%p433) target = $region76
        $region75: #{tpu_custom_call.1} parent=67 // pred_region
          %437 = dma.done [#allocation6], 64
        $region76: #{tpu_custom_call.1} parent=67 // pred_fallthru
          _
        // Predicated region
        $region77: #{tpu_custom_call.1} parent=67 // pred_check
          %p438 = pneg %p139
        $region78: #{tpu_custom_call.1} parent=67 // pred_check_branch
          %440 = sbr.rel (%p438) target = $region80
        $region79: #{tpu_custom_call.1} parent=67 // pred_region
          %442 = dma.done [#allocation6], 64
        $region80: #{tpu_custom_call.1} parent=67 // pred_fallthru
          _
        // Predicated region
        $region81: #{tpu_custom_call.1} parent=67 // pred_check
          %p443 = pneg %p160
        $region82: #{tpu_custom_call.1} parent=67 // pred_check_branch
          %445 = sbr.rel (%p443) target = $region84
        $region83: #{tpu_custom_call.1} parent=67 // pred_region
          %447 = dma.done [#allocation9], 64
        $region84: #{tpu_custom_call.1} parent=67 // pred_fallthru
          _
        %p448 = scmp.lt.s32.totalorder %s29, 1
        %s449 = scalar_select %p448, %s29, 1
        %s450 = smul.addr %s449, 4
        %s451 = smul.addr %s450, 8
        %s452 = scalar_lea.vmem %s0, %s451
        %p453 = pneg %p50
        %p454 = pneg %p47
        %p455 = scmp.lt.s32.totalorder %s29, 1
        %s456 = scalar_select %p455, %s29, 1
        %s457 = smul.addr %s456, 4
        %s458 = smul.addr %s457, 8
        %s459 = scalar_lea.vmem %s1, %s458
        %p460 = pneg %p76
        %p461 = pneg %p73
        %p462 = pneg %p97
        %p463 = pneg %p94
        %p464 = pneg %p118
        %p465 = pneg %p115
        %p466 = pneg %p139
        %p467 = pneg %p136
        %p468 = pneg %p160
        %p469 = pneg %p157
        %p470 = pneg %p181
        %p471 = pneg %p178
        %p472 = pneg %p202
        %p473 = pneg %p199
        %p474 = pneg %p223
        %p475 = pneg %p220
        %p476 = pneg %p244
        %p477 = pneg %p241
        %p478 = pneg %p265
        %p479 = pneg %p262
        %p480 = pneg %p286
        %p481 = pneg %p283
        %p482 = pneg %p312
        %p483 = pneg %p309
        %s484 = sand.u32 %s299, 1
        %s485 = scalar_lea.sflag [#allocation4], %s484
        %s486 = sand.u32 %s299, 1
        %s487 = smul.addr %s486, 8
        %s488 = scalar_lea.vmem [#allocation10], %s487
        %p489 = scmp.lt.s32.totalorder %s29, 1
        %s490 = scalar_select %p489, %s29, 1
        %s491 = smul.addr %s490, 4
        %s492 = smul.addr %s491, 8
        %s493 = scalar_lea.vmem %s0, %s492
        %p494 = scmp.lt.s32.totalorder %s29, 1
        %s495 = scalar_select %p494, %s29, 1
        %s496 = smul.addr %s495, 4
        %s497 = smul.addr %s496, 8
        %s498 = scalar_lea.vmem %s1, %s497
        %v499 = vld [vmem:[%s493] sm:$0xff]
        %v500 = vld [vmem:[%s493 + $0x8] sm:$0xff]
        %v501 = vld [vmem:[%s493 + $0x10] sm:$0xff]
        %v502 = vld [vmem:[%s493 + $0x18] sm:$0xff]
        %v503 = vld [vmem:[%s498] sm:$0xff]
        %v504 = vld [vmem:[%s498 + $0x8] sm:$0xff]
        %v505 = vld [vmem:[%s498 + $0x10] sm:$0xff]
        %v506 = vld [vmem:[%s498 + $0x18] sm:$0xff]
        %v507 = vld [vmem:[#allocation2] sm:$0x1]
        %v508 = vld [vmem:[#allocation2 + $0x1] sm:$0x1]
        %v509 = vld [vmem:[#allocation2 + $0x2] sm:$0x1]
        %v510 = vld [vmem:[#allocation2 + $0x3] sm:$0x1]
        %v511 = vld [vmem:[#allocation5] sm:$0x1]
        %v512 = vld [vmem:[#allocation5 + $0x1] sm:$0x1]
        %v513 = vld [vmem:[#allocation5 + $0x2] sm:$0x1]
        %v514 = vld [vmem:[#allocation5 + $0x3] sm:$0x1]
        %v515 = vld [vmem:[#allocation7] sm:$0x1]
        %v516 = vld [vmem:[#allocation7 + $0x1] sm:$0x1]
        %v517 = vld [vmem:[#allocation7 + $0x2] sm:$0x1]
        %v518 = vld [vmem:[#allocation7 + $0x3] sm:$0x1]
        %v519 = vld [vmem:[#allocation8] sm:$0x1]
        %v520 = vld [vmem:[#allocation8 + $0x1] sm:$0x1]
        %v521 = vld [vmem:[#allocation8 + $0x2] sm:$0x1]
        %v522 = vld [vmem:[#allocation8 + $0x3] sm:$0x1]
        %v523 = vld [vmem:[%s6] sm:$0x1]
        %v524 = vld [vmem:[%s7] sm:$0x1]
        %v525 = vld [vmem:[%s8] sm:$0xff]
        %v526 = vld [vmem:[%s8 + $0x8] sm:$0xff]
        %v527 = vld [vmem:[%s8 + $0x10] sm:$0xff]
        %v528 = vld [vmem:[%s8 + $0x18] sm:$0xff]
        %v529 = vld [vmem:[%s9] sm:$0x1]
        %v530 = vld [vmem:[%s10] sm:$0xff]
        %v531 = vld [vmem:[%s10 + $0x8] sm:$0xff]
        %v532 = vld [vmem:[%s10 + $0x10] sm:$0xff]
        %v533 = vld [vmem:[%s10 + $0x18] sm:$0xff]
        %v534 = vld [vmem:[%s10 + $0x20] sm:$0xff]
        %v535 = vld [vmem:[%s10 + $0x28] sm:$0xff]
        %v536 = vld [vmem:[%s10 + $0x30] sm:$0xff]
        %v537 = vld [vmem:[%s10 + $0x38] sm:$0xff]
        %v538 = vld [vmem:[%s10 + $0x40] sm:$0xff]
        %v539 = vld [vmem:[%s10 + $0x48] sm:$0xff]
        %v540 = vld [vmem:[%s10 + $0x50] sm:$0xff]
        %v541 = vld [vmem:[%s10 + $0x58] sm:$0xff]
        %v542 = vld [vmem:[%s10 + $0x60] sm:$0xff]
        %v543 = vld [vmem:[%s10 + $0x68] sm:$0xff]
        %v544 = vld [vmem:[%s10 + $0x70] sm:$0xff]
        %v545 = vld [vmem:[%s10 + $0x78] sm:$0xff]
        %v546 = vld [vmem:[%s11] sm:$0x1]
        %vm547 = vcmask 64512
        %v549 = vsel %vm547, %v499, 0
        %551 = vmatpush.xpose.msra.mxu0 0.0
        %552 = vmatpush.xpose.msra.mxu0 0.0
        %553 = vmatpush.xpose.msra.mxu0 0.0
        %554 = vmatpush.xpose.msra.mxu0 0.0
        %555 = vmatpush.xpose.msra.mxu0 0.0
        %556 = vmatpush.xpose.msra.mxu0 0.0
        %557 = vmatpush.xpose.msra.mxu0 0.0
        %558 = vmatpush.xpose.msra.mxu0 0.0
        %559 = vmatpush.xpose.msra.mxu0 0.0
        %560 = vmatpush.xpose.msra.mxu0 0.0
        %561 = vmatpush.xpose.msra.mxu0 0.0
        %562 = vmatpush.xpose.msra.mxu0 0.0
        %563 = vmatpush.xpose.msra.mxu0 0.0
        %564 = vmatpush.xpose.msra.mxu0 0.0
        %565 = vmatpush.xpose.msra.mxu0 0.0
        %566 = vmatpush.xpose.msra.mxu0 %v549
        %567 = vmatmul.f32.gmra.mxu0 %v549
        %v568 = vpop.f32.mrf.mxu0
        %v569 = vadd.f32 0.0, %v568
        %570 = vdwg.mxu0
        %v572 = vsel %vm547, %v500, 0
        %574 = vmatpush.xpose.msra.mxu0 0.0
        %575 = vmatpush.xpose.msra.mxu0 0.0
        %576 = vmatpush.xpose.msra.mxu0 0.0
        %577 = vmatpush.xpose.msra.mxu0 0.0
        %578 = vmatpush.xpose.msra.mxu0 0.0
        %579 = vmatpush.xpose.msra.mxu0 0.0
        %580 = vmatpush.xpose.msra.mxu0 0.0
        %581 = vmatpush.xpose.msra.mxu0 0.0
        %582 = vmatpush.xpose.msra.mxu0 0.0
        %583 = vmatpush.xpose.msra.mxu0 0.0
        %584 = vmatpush.xpose.msra.mxu0 0.0
        %585 = vmatpush.xpose.msra.mxu0 0.0
        %586 = vmatpush.xpose.msra.mxu0 0.0
        %587 = vmatpush.xpose.msra.mxu0 0.0
        %588 = vmatpush.xpose.msra.mxu0 0.0
        %589 = vmatpush.xpose.msra.mxu0 %v572
        %590 = vmatmul.f32.gmra.mxu0 %v572
        %v591 = vpop.f32.mrf.mxu0
        %v592 = vadd.f32 0.0, %v591
        %593 = vdwg.mxu0
        %v595 = vsel %vm547, %v501, 0
        %597 = vmatpush.xpose.msra.mxu0 0.0
        %598 = vmatpush.xpose.msra.mxu0 0.0
        %599 = vmatpush.xpose.msra.mxu0 0.0
        %600 = vmatpush.xpose.msra.mxu0 0.0
        %601 = vmatpush.xpose.msra.mxu0 0.0
        %602 = vmatpush.xpose.msra.mxu0 0.0
        %603 = vmatpush.xpose.msra.mxu0 0.0
        %604 = vmatpush.xpose.msra.mxu0 0.0
        %605 = vmatpush.xpose.msra.mxu0 0.0
        %606 = vmatpush.xpose.msra.mxu0 0.0
        %607 = vmatpush.xpose.msra.mxu0 0.0
        %608 = vmatpush.xpose.msra.mxu0 0.0
        %609 = vmatpush.xpose.msra.mxu0 0.0
        %610 = vmatpush.xpose.msra.mxu0 0.0
        %611 = vmatpush.xpose.msra.mxu0 0.0
        %612 = vmatpush.xpose.msra.mxu0 %v595
        %613 = vmatmul.f32.gmra.mxu0 %v595
        %v614 = vpop.f32.mrf.mxu0
        %v615 = vadd.f32 0.0, %v614
        %616 = vdwg.mxu0
        %v618 = vsel %vm547, %v502, 0
        %620 = vmatpush.xpose.msra.mxu0 0.0
        %621 = vmatpush.xpose.msra.mxu0 0.0
        %622 = vmatpush.xpose.msra.mxu0 0.0
        %623 = vmatpush.xpose.msra.mxu0 0.0
        %624 = vmatpush.xpose.msra.mxu0 0.0
        %625 = vmatpush.xpose.msra.mxu0 0.0
        %626 = vmatpush.xpose.msra.mxu0 0.0
        %627 = vmatpush.xpose.msra.mxu0 0.0
        %628 = vmatpush.xpose.msra.mxu0 0.0
        %629 = vmatpush.xpose.msra.mxu0 0.0
        %630 = vmatpush.xpose.msra.mxu0 0.0
        %631 = vmatpush.xpose.msra.mxu0 0.0
        %632 = vmatpush.xpose.msra.mxu0 0.0
        %633 = vmatpush.xpose.msra.mxu0 0.0
        %634 = vmatpush.xpose.msra.mxu0 0.0
        %635 = vmatpush.xpose.msra.mxu0 %v618
        %636 = vmatmul.f32.gmra.mxu0 %v618
        %v637 = vpop.f32.mrf.mxu0
        %v638 = vadd.f32 0.0, %v637
        %639 = vdwg.mxu0
        %v640 = vmul.f32 %v569, 0.35355338
        %v641 = vmul.f32 %v592, 0.35355338
        %v642 = vmul.f32 %v615, 0.35355338
        %v643 = vmul.f32 %v638, 0.35355338
        %v644 = vsel %vm547, %v640, -inf
        %645 = vmax.xlane.f32.xlu0 %v644
        %v646 = vpop.xlane.xlu0 %645
        %v647 = vsel %vm547, %v641, -inf
        %648 = vmax.xlane.f32.xlu0 %v647
        %v649 = vpop.xlane.xlu0 %648
        %v650 = vsel %vm547, %v642, -inf
        %651 = vmax.xlane.f32.xlu0 %v650
        %v652 = vpop.xlane.xlu0 %651
        %v653 = vsel %vm547, %v643, -inf
        %654 = vmax.xlane.f32.xlu0 %v653
        %v655 = vpop.xlane.xlu0 %654
        %v656 = vsub.f32 %v640, %v646
        %v657 = vsub.f32 %v641, %v649
        %v658 = vsub.f32 %v642, %v652
        %v659 = vsub.f32 %v643, %v655
        %v660 = vmul.f32 %v656, 1.442695
        %v661 = vpow.pop %v660
        %v662 = vmul.f32 %v657, 1.442695
        %v663 = vpow.pop %v662
        %v664 = vmul.f32 %v658, 1.442695
        %v665 = vpow.pop %v664
        %v666 = vmul.f32 %v659, 1.442695
        %v667 = vpow.pop %v666
        %v668 = vsel %vm547, %v661, 0.0
        %669 = vadd.xlane.f32.xlu0 %v668
        %v670 = vpop.xlane.xlu0 %669
        %v671 = vsel %vm547, %v663, 0.0
        %672 = vadd.xlane.f32.xlu0 %v671
        %v673 = vpop.xlane.xlu0 %672
        %v674 = vsel %vm547, %v665, 0.0
        %675 = vadd.xlane.f32.xlu0 %v674
        %v676 = vpop.xlane.xlu0 %675
        %v677 = vsel %vm547, %v667, 0.0
        %678 = vadd.xlane.f32.xlu0 %v677
        %v679 = vpop.xlane.xlu0 %678
        %v680 = vrcp.pop %v670
        %v681 = vrcp.pop %v673
        %v682 = vrcp.pop %v676
        %v683 = vrcp.pop %v679
        %v684 = vmul.f32 %v670, %v680
        %v685 = vmul.f32 %v673, %v681
        %v686 = vmul.f32 %v676, %v682
        %v687 = vmul.f32 %v679, %v683
        %v688 = vsub.f32 2.0, %v684
        %v689 = vsub.f32 2.0, %v685
        %v690 = vsub.f32 2.0, %v686
        %v691 = vsub.f32 2.0, %v687
        %v692 = vmul.f32 %v680, %v688
        %v693 = vmul.f32 %v681, %v689
        %v694 = vmul.f32 %v682, %v690
        %v695 = vmul.f32 %v683, %v691
        %v696 = vmul.f32 %v661, %v692
        %v697 = vmul.f32 %v663, %v693
        %v698 = vmul.f32 %v665, %v694
        %v699 = vmul.f32 %v667, %v695
        %v701 = vsel %vm547, %v696, 0
        %703 = vmatpush.msra.mxu0 0.0
        %704 = vmatpush.msra.mxu0 0.0
        %705 = vmatpush.msra.mxu0 0.0
        %706 = vmatpush.msra.mxu0 0.0
        %707 = vmatpush.msra.mxu0 0.0
        %708 = vmatpush.msra.mxu0 0.0
        %709 = vmatpush.msra.mxu0 0.0
        %710 = vmatpush.msra.mxu0 0.0
        %711 = vmatpush.msra.mxu0 0.0
        %712 = vmatpush.msra.mxu0 0.0
        %713 = vmatpush.msra.mxu0 0.0
        %714 = vmatpush.msra.mxu0 0.0
        %715 = vmatpush.msra.mxu0 0.0
        %716 = vmatpush.msra.mxu0 0.0
        %717 = vmatpush.msra.mxu0 0.0
        %718 = vmatpush.msra.mxu0 %v499
        %719 = vmatmul.f32.gmra.mxu0 %v701
        %v720 = vpop.f32.mrf.mxu0
        %v721 = vadd.f32 0.0, %v720
        %722 = vdwg.mxu0
        %v724 = vsel %vm547, %v697, 0
        %726 = vmatpush.msra.mxu0 0.0
        %727 = vmatpush.msra.mxu0 0.0
        %728 = vmatpush.msra.mxu0 0.0
        %729 = vmatpush.msra.mxu0 0.0
        %730 = vmatpush.msra.mxu0 0.0
        %731 = vmatpush.msra.mxu0 0.0
        %732 = vmatpush.msra.mxu0 0.0
        %733 = vmatpush.msra.mxu0 0.0
        %734 = vmatpush.msra.mxu0 0.0
        %735 = vmatpush.msra.mxu0 0.0
        %736 = vmatpush.msra.mxu0 0.0
        %737 = vmatpush.msra.mxu0 0.0
        %738 = vmatpush.msra.mxu0 0.0
        %739 = vmatpush.msra.mxu0 0.0
        %740 = vmatpush.msra.mxu0 0.0
        %741 = vmatpush.msra.mxu0 %v500
        %742 = vmatmul.f32.gmra.mxu0 %v724
        %v743 = vpop.f32.mrf.mxu0
        %v744 = vadd.f32 0.0, %v743
        %745 = vdwg.mxu0
        %v747 = vsel %vm547, %v698, 0
        %749 = vmatpush.msra.mxu0 0.0
        %750 = vmatpush.msra.mxu0 0.0
        %751 = vmatpush.msra.mxu0 0.0
        %752 = vmatpush.msra.mxu0 0.0
        %753 = vmatpush.msra.mxu0 0.0
        %754 = vmatpush.msra.mxu0 0.0
        %755 = vmatpush.msra.mxu0 0.0
        %756 = vmatpush.msra.mxu0 0.0
        %757 = vmatpush.msra.mxu0 0.0
        %758 = vmatpush.msra.mxu0 0.0
        %759 = vmatpush.msra.mxu0 0.0
        %760 = vmatpush.msra.mxu0 0.0
        %761 = vmatpush.msra.mxu0 0.0
        %762 = vmatpush.msra.mxu0 0.0
        %763 = vmatpush.msra.mxu0 0.0
        %764 = vmatpush.msra.mxu0 %v501
        %765 = vmatmul.f32.gmra.mxu0 %v747
        %v766 = vpop.f32.mrf.mxu0
        %v767 = vadd.f32 0.0, %v766
        %768 = vdwg.mxu0
        %v770 = vsel %vm547, %v699, 0
        %772 = vmatpush.msra.mxu0 0.0
        %773 = vmatpush.msra.mxu0 0.0
        %774 = vmatpush.msra.mxu0 0.0
        %775 = vmatpush.msra.mxu0 0.0
        %776 = vmatpush.msra.mxu0 0.0
        %777 = vmatpush.msra.mxu0 0.0
        %778 = vmatpush.msra.mxu0 0.0
        %779 = vmatpush.msra.mxu0 0.0
        %780 = vmatpush.msra.mxu0 0.0
        %781 = vmatpush.msra.mxu0 0.0
        %782 = vmatpush.msra.mxu0 0.0
        %783 = vmatpush.msra.mxu0 0.0
        %784 = vmatpush.msra.mxu0 0.0
        %785 = vmatpush.msra.mxu0 0.0
        %786 = vmatpush.msra.mxu0 0.0
        %787 = vmatpush.msra.mxu0 %v502
        %788 = vmatmul.f32.gmra.mxu0 %v770
        %v789 = vpop.f32.mrf.mxu0
        %v790 = vadd.f32 0.0, %v789
        %791 = vdwg.mxu0
        %v792 = vadd.f32 %v499, %v721
        %v793 = vadd.f32 %v500, %v744
        %v794 = vadd.f32 %v501, %v767
        %v795 = vadd.f32 %v502, %v790
        %v796 = vsel %vm547, %v792, 0.0
        %797 = vadd.xlane.f32.xlu0 %v796
        %v798 = vpop.xlane.xlu0 %797
        %v799 = vsel %vm547, %v793, 0.0
        %800 = vadd.xlane.f32.xlu0 %v799
        %v801 = vpop.xlane.xlu0 %800
        %v802 = vsel %vm547, %v794, 0.0
        %803 = vadd.xlane.f32.xlu0 %v802
        %v804 = vpop.xlane.xlu0 %803
        %v805 = vsel %vm547, %v795, 0.0
        %806 = vadd.xlane.f32.xlu0 %v805
        %v807 = vpop.xlane.xlu0 %806
        %v808 = vadd.f32 %v798, %v801
        %v809 = vadd.f32 %v808, %v804
        %v810 = vadd.f32 %v809, %v807
        %v811 = vmul.f32 %v810, 0.03125
        %v812 = vsub.f32 %v792, %v811
        %v813 = vsub.f32 %v793, %v811
        %v814 = vsub.f32 %v794, %v811
        %v815 = vsub.f32 %v795, %v811
        %v816 = vmul.f32 %v812, %v812
        %v817 = vmul.f32 %v813, %v813
        %v818 = vmul.f32 %v814, %v814
        %v819 = vmul.f32 %v815, %v815
        %v820 = vsel %vm547, %v816, 0.0
        %821 = vadd.xlane.f32.xlu0 %v820
        %v822 = vpop.xlane.xlu0 %821
        %v823 = vsel %vm547, %v817, 0.0
        %824 = vadd.xlane.f32.xlu0 %v823
        %v825 = vpop.xlane.xlu0 %824
        %v826 = vsel %vm547, %v818, 0.0
        %827 = vadd.xlane.f32.xlu0 %v826
        %v828 = vpop.xlane.xlu0 %827
        %v829 = vsel %vm547, %v819, 0.0
        %830 = vadd.xlane.f32.xlu0 %v829
        %v831 = vpop.xlane.xlu0 %830
        %v832 = vadd.f32 %v822, %v825
        %v833 = vadd.f32 %v832, %v828
        %v834 = vadd.f32 %v833, %v831
        %v835 = vmul.f32 %v834, 0.03125
        %v836 = vadd.f32 %v835, 1e-05
        %v837 = vrsqrt.pop %v836
        %v838 = vmul.f32 %v837, %v836
        %v839 = vmul.f32 %v838, %v837
        %v840 = vmul.f32 0.5, %v839
        %v841 = vsub.f32 1.5, %v840
        %v842 = vmul.f32 %v837, %v841
        %vm843 = vweird.f32 %v836
        %vm844 = vweird.f32 %v837
        %vm845 = vmor %vm843, %vm844
        %v846 = vsel %vm845, %v837, %v842
        %v847 = vmul.f32 %v812, %v846
        %v848 = vmul.f32 %v813, %v846
        %v849 = vmul.f32 %v814, %v846
        %v850 = vmul.f32 %v815, %v846
        %v855 = vperm.slane %v507, 0
        %v856 = vperm.slane %v508, 0
        %v857 = vperm.slane %v509, 0
        %v858 = vperm.slane %v510, 0
        %v863 = vmul.f32 %v847, %v855
        %v864 = vmul.f32 %v848, %v856
        %v865 = vmul.f32 %v849, %v857
        %v866 = vmul.f32 %v850, %v858
        %v871 = vperm.slane %v511, 0
        %v872 = vperm.slane %v512, 0
        %v873 = vperm.slane %v513, 0
        %v874 = vperm.slane %v514, 0
        %v879 = vadd.f32 %v863, %v871
        %v880 = vadd.f32 %v864, %v872
        %v881 = vadd.f32 %v865, %v873
        %v882 = vadd.f32 %v866, %v874
        %v884 = vsel %vm547, %v879, 0
        %v887 = vsel %vm547, %v503, 0
        %889 = vmatpush.xpose.msra.mxu0 0.0
        %890 = vmatpush.xpose.msra.mxu0 0.0
        %891 = vmatpush.xpose.msra.mxu0 0.0
        %892 = vmatpush.xpose.msra.mxu0 0.0
        %893 = vmatpush.xpose.msra.mxu0 0.0
        %894 = vmatpush.xpose.msra.mxu0 0.0
        %895 = vmatpush.xpose.msra.mxu0 0.0
        %896 = vmatpush.xpose.msra.mxu0 0.0
        %897 = vmatpush.xpose.msra.mxu0 0.0
        %898 = vmatpush.xpose.msra.mxu0 0.0
        %899 = vmatpush.xpose.msra.mxu0 0.0
        %900 = vmatpush.xpose.msra.mxu0 0.0
        %901 = vmatpush.xpose.msra.mxu0 0.0
        %902 = vmatpush.xpose.msra.mxu0 0.0
        %903 = vmatpush.xpose.msra.mxu0 0.0
        %904 = vmatpush.xpose.msra.mxu0 %v887
        %905 = vmatmul.f32.gmra.mxu0 %v884
        %v906 = vpop.f32.mrf.mxu0
        %v907 = vadd.f32 0.0, %v906
        %908 = vdwg.mxu0
        %v910 = vsel %vm547, %v880, 0
        %v913 = vsel %vm547, %v504, 0
        %915 = vmatpush.xpose.msra.mxu0 0.0
        %916 = vmatpush.xpose.msra.mxu0 0.0
        %917 = vmatpush.xpose.msra.mxu0 0.0
        %918 = vmatpush.xpose.msra.mxu0 0.0
        %919 = vmatpush.xpose.msra.mxu0 0.0
        %920 = vmatpush.xpose.msra.mxu0 0.0
        %921 = vmatpush.xpose.msra.mxu0 0.0
        %922 = vmatpush.xpose.msra.mxu0 0.0
        %923 = vmatpush.xpose.msra.mxu0 0.0
        %924 = vmatpush.xpose.msra.mxu0 0.0
        %925 = vmatpush.xpose.msra.mxu0 0.0
        %926 = vmatpush.xpose.msra.mxu0 0.0
        %927 = vmatpush.xpose.msra.mxu0 0.0
        %928 = vmatpush.xpose.msra.mxu0 0.0
        %929 = vmatpush.xpose.msra.mxu0 0.0
        %930 = vmatpush.xpose.msra.mxu0 %v913
        %931 = vmatmul.f32.gmra.mxu0 %v910
        %v932 = vpop.f32.mrf.mxu0
        %v933 = vadd.f32 0.0, %v932
        %934 = vdwg.mxu0
        %v936 = vsel %vm547, %v881, 0
        %v939 = vsel %vm547, %v505, 0
        %941 = vmatpush.xpose.msra.mxu0 0.0
        %942 = vmatpush.xpose.msra.mxu0 0.0
        %943 = vmatpush.xpose.msra.mxu0 0.0
        %944 = vmatpush.xpose.msra.mxu0 0.0
        %945 = vmatpush.xpose.msra.mxu0 0.0
        %946 = vmatpush.xpose.msra.mxu0 0.0
        %947 = vmatpush.xpose.msra.mxu0 0.0
        %948 = vmatpush.xpose.msra.mxu0 0.0
        %949 = vmatpush.xpose.msra.mxu0 0.0
        %950 = vmatpush.xpose.msra.mxu0 0.0
        %951 = vmatpush.xpose.msra.mxu0 0.0
        %952 = vmatpush.xpose.msra.mxu0 0.0
        %953 = vmatpush.xpose.msra.mxu0 0.0
        %954 = vmatpush.xpose.msra.mxu0 0.0
        %955 = vmatpush.xpose.msra.mxu0 0.0
        %956 = vmatpush.xpose.msra.mxu0 %v939
        %957 = vmatmul.f32.gmra.mxu0 %v936
        %v958 = vpop.f32.mrf.mxu0
        %v959 = vadd.f32 0.0, %v958
        %960 = vdwg.mxu0
        %v962 = vsel %vm547, %v882, 0
        %v965 = vsel %vm547, %v506, 0
        %967 = vmatpush.xpose.msra.mxu0 0.0
        %968 = vmatpush.xpose.msra.mxu0 0.0
        %969 = vmatpush.xpose.msra.mxu0 0.0
        %970 = vmatpush.xpose.msra.mxu0 0.0
        %971 = vmatpush.xpose.msra.mxu0 0.0
        %972 = vmatpush.xpose.msra.mxu0 0.0
        %973 = vmatpush.xpose.msra.mxu0 0.0
        %974 = vmatpush.xpose.msra.mxu0 0.0
        %975 = vmatpush.xpose.msra.mxu0 0.0
        %976 = vmatpush.xpose.msra.mxu0 0.0
        %977 = vmatpush.xpose.msra.mxu0 0.0
        %978 = vmatpush.xpose.msra.mxu0 0.0
        %979 = vmatpush.xpose.msra.mxu0 0.0
        %980 = vmatpush.xpose.msra.mxu0 0.0
        %981 = vmatpush.xpose.msra.mxu0 0.0
        %982 = vmatpush.xpose.msra.mxu0 %v965
        %983 = vmatmul.f32.gmra.mxu0 %v962
        %v984 = vpop.f32.mrf.mxu0
        %v985 = vadd.f32 0.0, %v984
        %986 = vdwg.mxu0
        %v987 = vmul.f32 %v907, 0.35355338
        %v988 = vmul.f32 %v933, 0.35355338
        %v989 = vmul.f32 %v959, 0.35355338
        %v990 = vmul.f32 %v985, 0.35355338
        %v991 = vsel %vm547, %v987, -inf
        %992 = vmax.xlane.f32.xlu0 %v991
        %v993 = vpop.xlane.xlu0 %992
        %v994 = vsel %vm547, %v988, -inf
        %995 = vmax.xlane.f32.xlu0 %v994
        %v996 = vpop.xlane.xlu0 %995
        %v997 = vsel %vm547, %v989, -inf
        %998 = vmax.xlane.f32.xlu0 %v997
        %v999 = vpop.xlane.xlu0 %998
        %v1000 = vsel %vm547, %v990, -inf
        %1001 = vmax.xlane.f32.xlu0 %v1000
        %v1002 = vpop.xlane.xlu0 %1001
        %v1003 = vsub.f32 %v987, %v993
        %v1004 = vsub.f32 %v988, %v996
        %v1005 = vsub.f32 %v989, %v999
        %v1006 = vsub.f32 %v990, %v1002
        %v1007 = vmul.f32 %v1003, 1.442695
        %v1008 = vpow.pop %v1007
        %v1009 = vmul.f32 %v1004, 1.442695
        %v1010 = vpow.pop %v1009
        %v1011 = vmul.f32 %v1005, 1.442695
        %v1012 = vpow.pop %v1011
        %v1013 = vmul.f32 %v1006, 1.442695
        %v1014 = vpow.pop %v1013
        %v1015 = vsel %vm547, %v1008, 0.0
        %1016 = vadd.xlane.f32.xlu0 %v1015
        %v1017 = vpop.xlane.xlu0 %1016
        %v1018 = vsel %vm547, %v1010, 0.0
        %1019 = vadd.xlane.f32.xlu0 %v1018
        %v1020 = vpop.xlane.xlu0 %1019
        %v1021 = vsel %vm547, %v1012, 0.0
        %1022 = vadd.xlane.f32.xlu0 %v1021
        %v1023 = vpop.xlane.xlu0 %1022
        %v1024 = vsel %vm547, %v1014, 0.0
        %1025 = vadd.xlane.f32.xlu0 %v1024
        %v1026 = vpop.xlane.xlu0 %1025
        %v1027 = vrcp.pop %v1017
        %v1028 = vrcp.pop %v1020
        %v1029 = vrcp.pop %v1023
        %v1030 = vrcp.pop %v1026
        %v1031 = vmul.f32 %v1017, %v1027
        %v1032 = vmul.f32 %v1020, %v1028
        %v1033 = vmul.f32 %v1023, %v1029
        %v1034 = vmul.f32 %v1026, %v1030
        %v1035 = vsub.f32 2.0, %v1031
        %v1036 = vsub.f32 2.0, %v1032
        %v1037 = vsub.f32 2.0, %v1033
        %v1038 = vsub.f32 2.0, %v1034
        %v1039 = vmul.f32 %v1027, %v1035
        %v1040 = vmul.f32 %v1028, %v1036
        %v1041 = vmul.f32 %v1029, %v1037
        %v1042 = vmul.f32 %v1030, %v1038
        %v1043 = vmul.f32 %v1008, %v1039
        %v1044 = vmul.f32 %v1010, %v1040
        %v1045 = vmul.f32 %v1012, %v1041
        %v1046 = vmul.f32 %v1014, %v1042
        %v1048 = vsel %vm547, %v1043, 0
        %1050 = vmatpush.msra.mxu0 0.0
        %1051 = vmatpush.msra.mxu0 0.0
        %1052 = vmatpush.msra.mxu0 0.0
        %1053 = vmatpush.msra.mxu0 0.0
        %1054 = vmatpush.msra.mxu0 0.0
        %1055 = vmatpush.msra.mxu0 0.0
        %1056 = vmatpush.msra.mxu0 0.0
        %1057 = vmatpush.msra.mxu0 0.0
        %1058 = vmatpush.msra.mxu0 0.0
        %1059 = vmatpush.msra.mxu0 0.0
        %1060 = vmatpush.msra.mxu0 0.0
        %1061 = vmatpush.msra.mxu0 0.0
        %1062 = vmatpush.msra.mxu0 0.0
        %1063 = vmatpush.msra.mxu0 0.0
        %1064 = vmatpush.msra.mxu0 0.0
        %1065 = vmatpush.msra.mxu0 %v503
        %1066 = vmatmul.f32.gmra.mxu0 %v1048
        %v1067 = vpop.f32.mrf.mxu0
        %v1068 = vadd.f32 0.0, %v1067
        %1069 = vdwg.mxu0
        %v1071 = vsel %vm547, %v1044, 0
        %1073 = vmatpush.msra.mxu0 0.0
        %1074 = vmatpush.msra.mxu0 0.0
        %1075 = vmatpush.msra.mxu0 0.0
        %1076 = vmatpush.msra.mxu0 0.0
        %1077 = vmatpush.msra.mxu0 0.0
        %1078 = vmatpush.msra.mxu0 0.0
        %1079 = vmatpush.msra.mxu0 0.0
        %1080 = vmatpush.msra.mxu0 0.0
        %1081 = vmatpush.msra.mxu0 0.0
        %1082 = vmatpush.msra.mxu0 0.0
        %1083 = vmatpush.msra.mxu0 0.0
        %1084 = vmatpush.msra.mxu0 0.0
        %1085 = vmatpush.msra.mxu0 0.0
        %1086 = vmatpush.msra.mxu0 0.0
        %1087 = vmatpush.msra.mxu0 0.0
        %1088 = vmatpush.msra.mxu0 %v504
        %1089 = vmatmul.f32.gmra.mxu0 %v1071
        %v1090 = vpop.f32.mrf.mxu0
        %v1091 = vadd.f32 0.0, %v1090
        %1092 = vdwg.mxu0
        %v1094 = vsel %vm547, %v1045, 0
        %1096 = vmatpush.msra.mxu0 0.0
        %1097 = vmatpush.msra.mxu0 0.0
        %1098 = vmatpush.msra.mxu0 0.0
        %1099 = vmatpush.msra.mxu0 0.0
        %1100 = vmatpush.msra.mxu0 0.0
        %1101 = vmatpush.msra.mxu0 0.0
        %1102 = vmatpush.msra.mxu0 0.0
        %1103 = vmatpush.msra.mxu0 0.0
        %1104 = vmatpush.msra.mxu0 0.0
        %1105 = vmatpush.msra.mxu0 0.0
        %1106 = vmatpush.msra.mxu0 0.0
        %1107 = vmatpush.msra.mxu0 0.0
        %1108 = vmatpush.msra.mxu0 0.0
        %1109 = vmatpush.msra.mxu0 0.0
        %1110 = vmatpush.msra.mxu0 0.0
        %1111 = vmatpush.msra.mxu0 %v505
        %1112 = vmatmul.f32.gmra.mxu0 %v1094
        %v1113 = vpop.f32.mrf.mxu0
        %v1114 = vadd.f32 0.0, %v1113
        %1115 = vdwg.mxu0
        %v1117 = vsel %vm547, %v1046, 0
        %1119 = vmatpush.msra.mxu0 0.0
        %1120 = vmatpush.msra.mxu0 0.0
        %1121 = vmatpush.msra.mxu0 0.0
        %1122 = vmatpush.msra.mxu0 0.0
        %1123 = vmatpush.msra.mxu0 0.0
        %1124 = vmatpush.msra.mxu0 0.0
        %1125 = vmatpush.msra.mxu0 0.0
        %1126 = vmatpush.msra.mxu0 0.0
        %1127 = vmatpush.msra.mxu0 0.0
        %1128 = vmatpush.msra.mxu0 0.0
        %1129 = vmatpush.msra.mxu0 0.0
        %1130 = vmatpush.msra.mxu0 0.0
        %1131 = vmatpush.msra.mxu0 0.0
        %1132 = vmatpush.msra.mxu0 0.0
        %1133 = vmatpush.msra.mxu0 0.0
        %1134 = vmatpush.msra.mxu0 %v506
        %1135 = vmatmul.f32.gmra.mxu0 %v1117
        %v1136 = vpop.f32.mrf.mxu0
        %v1137 = vadd.f32 0.0, %v1136
        %1138 = vdwg.mxu0
        %v1139 = vadd.f32 %v879, %v1068
        %v1140 = vadd.f32 %v880, %v1091
        %v1141 = vadd.f32 %v881, %v1114
        %v1142 = vadd.f32 %v882, %v1137
        %v1143 = vsel %vm547, %v1139, 0.0
        %1144 = vadd.xlane.f32.xlu0 %v1143
        %v1145 = vpop.xlane.xlu0 %1144
        %v1146 = vsel %vm547, %v1140, 0.0
        %1147 = vadd.xlane.f32.xlu0 %v1146
        %v1148 = vpop.xlane.xlu0 %1147
        %v1149 = vsel %vm547, %v1141, 0.0
        %1150 = vadd.xlane.f32.xlu0 %v1149
        %v1151 = vpop.xlane.xlu0 %1150
        %v1152 = vsel %vm547, %v1142, 0.0
        %1153 = vadd.xlane.f32.xlu0 %v1152
        %v1154 = vpop.xlane.xlu0 %1153
        %v1155 = vadd.f32 %v1145, %v1148
        %v1156 = vadd.f32 %v1155, %v1151
        %v1157 = vadd.f32 %v1156, %v1154
        %v1158 = vmul.f32 %v1157, 0.03125
        %v1159 = vsub.f32 %v1139, %v1158
        %v1160 = vsub.f32 %v1140, %v1158
        %v1161 = vsub.f32 %v1141, %v1158
        %v1162 = vsub.f32 %v1142, %v1158
        %v1163 = vmul.f32 %v1159, %v1159
        %v1164 = vmul.f32 %v1160, %v1160
        %v1165 = vmul.f32 %v1161, %v1161
        %v1166 = vmul.f32 %v1162, %v1162
        %v1167 = vsel %vm547, %v1163, 0.0
        %1168 = vadd.xlane.f32.xlu0 %v1167
        %v1169 = vpop.xlane.xlu0 %1168
        %v1170 = vsel %vm547, %v1164, 0.0
        %1171 = vadd.xlane.f32.xlu0 %v1170
        %v1172 = vpop.xlane.xlu0 %1171
        %v1173 = vsel %vm547, %v1165, 0.0
        %1174 = vadd.xlane.f32.xlu0 %v1173
        %v1175 = vpop.xlane.xlu0 %1174
        %v1176 = vsel %vm547, %v1166, 0.0
        %1177 = vadd.xlane.f32.xlu0 %v1176
        %v1178 = vpop.xlane.xlu0 %1177
        %v1179 = vadd.f32 %v1169, %v1172
        %v1180 = vadd.f32 %v1179, %v1175
        %v1181 = vadd.f32 %v1180, %v1178
        %v1182 = vmul.f32 %v1181, 0.03125
        %v1183 = vadd.f32 %v1182, 1e-05
        %v1184 = vrsqrt.pop %v1183
        %v1185 = vmul.f32 %v1184, %v1183
        %v1186 = vmul.f32 %v1185, %v1184
        %v1187 = vmul.f32 0.5, %v1186
        %v1188 = vsub.f32 1.5, %v1187
        %v1189 = vmul.f32 %v1184, %v1188
        %vm1190 = vweird.f32 %v1183
        %vm1191 = vweird.f32 %v1184
        %vm1192 = vmor %vm1190, %vm1191
        %v1193 = vsel %vm1192, %v1184, %v1189
        %v1194 = vmul.f32 %v1159, %v1193
        %v1195 = vmul.f32 %v1160, %v1193
        %v1196 = vmul.f32 %v1161, %v1193
        %v1197 = vmul.f32 %v1162, %v1193
        %v1202 = vperm.slane %v515, 0
        %v1203 = vperm.slane %v516, 0
        %v1204 = vperm.slane %v517, 0
        %v1205 = vperm.slane %v518, 0
        %v1210 = vmul.f32 %v1194, %v1202
        %v1211 = vmul.f32 %v1195, %v1203
        %v1212 = vmul.f32 %v1196, %v1204
        %v1213 = vmul.f32 %v1197, %v1205
        %v1218 = vperm.slane %v519, 0
        %v1219 = vperm.slane %v520, 0
        %v1220 = vperm.slane %v521, 0
        %v1221 = vperm.slane %v522, 0
        %v1226 = vadd.f32 %v1210, %v1218
        %v1227 = vadd.f32 %v1211, %v1219
        %v1228 = vadd.f32 %v1212, %v1220
        %v1229 = vadd.f32 %v1213, %v1221
        %1231 = vrot.lane.b32.xlu0 %v1227, 8
        %v1232 = vpop.permute.xlu0 %1231
        %1235 = vrot.lane.b32.xlu0 %v1228, 16
        %v1236 = vpop.permute.xlu0 %1235
        %1239 = vrot.lane.b32.xlu0 %v1229, 24
        %v1240 = vpop.permute.xlu0 %1239
        %v1242 = vsel %vm547, %v1226, %v1232
        %vm1243 = vcmask 130048
        %v1244 = vsel %vm1243, %v1242, %v1236
        %vm1245 = vcmask 195584
        %v1246 = vsel %vm1245, %v1244, %v1240
        %v1248 = vperm.slane %v529, 0
        %vm1250 = vcmask 261120
        %v1252 = vsel %vm1250, %v1246, 0
        %1254 = vmatpush.msra.mxu0 0.0
        %1255 = vmatpush.msra.mxu0 0.0
        %1256 = vmatpush.msra.mxu0 0.0
        %1257 = vmatpush.msra.mxu0 0.0
        %1258 = vmatpush.msra.mxu0 0.0
        %1259 = vmatpush.msra.mxu0 0.0
        %1260 = vmatpush.msra.mxu0 0.0
        %1261 = vmatpush.msra.mxu0 0.0
        %1262 = vmatpush.msra.mxu0 0.0
        %1263 = vmatpush.msra.mxu0 0.0
        %1264 = vmatpush.msra.mxu0 0.0
        %1265 = vmatpush.msra.mxu0 0.0
        %1266 = vmatpush.msra.mxu0 %v528
        %1267 = vmatpush.msra.mxu0 %v527
        %1268 = vmatpush.msra.mxu0 %v526
        %1269 = vmatpush.msra.mxu0 %v525
        %1270 = vmatmul.f32.gmra.mxu0 %v1252
        %v1271 = vpop.f32.mrf.mxu0
        %v1272 = vadd.f32 %v1248, %v1271
        %1273 = vdwg.mxu0
        %v1274 = vmax.f32 %v1272, 0.0
        %v1276 = vperm.slane %v546, 0
        %1278 = vmatpush.msra.mxu0 %v545
        %1279 = vmatpush.msra.mxu0 %v544
        %1280 = vmatpush.msra.mxu0 %v543
        %1281 = vmatpush.msra.mxu0 %v542
        %1282 = vmatpush.msra.mxu0 %v541
        %1283 = vmatpush.msra.mxu0 %v540
        %1284 = vmatpush.msra.mxu0 %v539
        %1285 = vmatpush.msra.mxu0 %v538
        %1286 = vmatpush.msra.mxu0 %v537
        %1287 = vmatpush.msra.mxu0 %v536
        %1288 = vmatpush.msra.mxu0 %v535
        %1289 = vmatpush.msra.mxu0 %v534
        %1290 = vmatpush.msra.mxu0 %v533
        %1291 = vmatpush.msra.mxu0 %v532
        %1292 = vmatpush.msra.mxu0 %v531
        %1293 = vmatpush.msra.mxu0 %v530
        %1294 = vmatmul.f32.gmra.mxu0 %v1274
        %v1295 = vpop.f32.mrf.mxu0
        %v1296 = vadd.f32 %v1276, %v1295
        %1297 = vdwg.mxu0
        %v1298 = vadd.f32 %v1246, %v1296
        %v1299 = vsel %vm1250, %v1298, 0.0
        %1300 = vadd.xlane.f32.xlu0 %v1299
        %v1301 = vpop.xlane.xlu0 %1300
        %v1302 = vrcp.pop 32.0
        %v1303 = vmul.f32 32.0, %v1302
        %v1304 = vsub.f32 1.0, %v1303
        %v1305 = vmul.f32 %v1302, %v1304
        %v1306 = vadd.f32 %v1302, %v1305
        %vm1307 = vweird.f32 %v1302
        %v1308 = vsel %vm1307, %v1302, %v1306
        %v1309 = vmul.f32 %v1301, %v1308
        %v1310 = vsub.f32 %v1298, %v1309
        %v1311 = vmul.f32 %v1310, %v1310
        %v1312 = vsel %vm1250, %v1311, 0.0
        %1313 = vadd.xlane.f32.xlu0 %v1312
        %v1314 = vpop.xlane.xlu0 %1313
        %v1315 = vmul.f32 %v1314, %v1308
        %v1316 = vadd.f32 %v1315, 1e-05
        %v1317 = vrsqrt.pop %v1316
        %v1318 = vmul.f32 %v1317, %v1316
        %v1319 = vmul.f32 %v1318, %v1317
        %v1320 = vmul.f32 0.5, %v1319
        %v1321 = vsub.f32 1.5, %v1320
        %v1322 = vmul.f32 %v1317, %v1321
        %vm1323 = vweird.f32 %v1316
        %vm1324 = vweird.f32 %v1317
        %vm1325 = vmor %vm1323, %vm1324
        %v1326 = vsel %vm1325, %v1317, %v1322
        %v1327 = vmul.f32 %v1310, %v1326
        %v1329 = vperm.slane %v523, 0
        %v1331 = vmul.f32 %v1327, %v1329
        %v1333 = vperm.slane %v524, 0
        %v1335 = vadd.f32 %v1331, %v1333
        %1336 = vst.msk [vmem:[%s488] sm:$0xff] %vm1250, %v1335
        %s1337 = sand.u32 %s299, 1
        %s1338 = scalar_lea.sflag [#allocation4], %s1337
        %s1339 = sand.u32 %s299, 1
        %s1340 = smul.addr %s1339, 8
        %s1341 = scalar_lea.vmem [#allocation10], %s1340
        // Predicated region
        $region85: #{tpu_custom_call.1} parent=67 // pred_check
          %p1342 = pneg %p309
        $region86: #{tpu_custom_call.1} parent=67 // pred_check_branch
          %1344 = sbr.rel (%p1342) target = $region88
        $region87: #{tpu_custom_call.1} parent=67 // pred_region
          %1346 = vsyncadd %s1338, 0
          %s1347 = smul.addr %s29, 8
          %s1348 = scalar_lea.hbm %s12, %s1347
          %s1350 = sshll.u32 %s1341, 4
          %s1351 = int_to_ptr.vmem [resolvable:$true] %s1350
          %s1352 = sshll.u32 %s1348, 4
          %s1353 = int_to_ptr.hbm [resolvable:$true] %s1352
          %1355 = dma.vmem_to_hbm [thread:$0]  %s1351, 128, %s1353, %s1338
        $region88: #{tpu_custom_call.1} parent=67 // pred_fallthru
          _
      $region68: #{tpu_custom_call.1} parent=5 // pred_fallthru
        _
      %p1356 = scmp.le.s32.totalorder 2, %s24
      // Predicated region
      $region89: #{tpu_custom_call.1} parent=5 // pred_check
        %p1357 = pneg %p1356
      $region90: #{tpu_custom_call.1} parent=5 // pred_check_branch
        %1359 = sbr.rel (%p1357) target = $region92
      $region91: #{tpu_custom_call.1} parent=5 // pred_region
        %s1360 = ssub.s32 %s24, 2
        // Predicated region
        $region93: #{tpu_custom_call.1} parent=91 // pred_check
          %p1361 = pneg %p315
        $region94: #{tpu_custom_call.1} parent=91 // pred_check_branch
          %1363 = sbr.rel (%p1361) target = $region96
        $region95: #{tpu_custom_call.1} parent=91 // pred_region
          %s1364 = sand.u32 %s300, 1
          %s1365 = scalar_lea.sflag [#allocation4], %s1364
          %s1366 = sand.u32 %s300, 1
          %s1367 = smul.addr %s1366, 8
          %s1368 = scalar_lea.vmem [#allocation10], %s1367
          %1370 = dma.done %s1365, 128
        $region96: #{tpu_custom_call.1} parent=91 // pred_fallthru
          _
      $region92: #{tpu_custom_call.1} parent=5 // pred_fallthru
        _
    $region6: #{tpu_custom_call.1} parent=1 // loop_footer
      %s28 = sadd.s32 1, %s24
    $region7: #{tpu_custom_call.1} parent=1 // loop_footer_branch
      %23 = sbr.rel target = $region3
    $region8: #{tpu_custom_call.1} parent=1 // loop_exit
      _
    %1371 = vsyncpa [#allocation3], 1
    %s1372 = scalar_lea.sflag [#allocation3], 1
    %1373 = vsyncpa %s1372, 1
    %1374 = vsyncpa [#allocation6], 1
    %1375 = vsyncpa [#allocation9], 1
    %1376 = vsyncpa [#allocation4], 1
    %s1377 = scalar_lea.sflag [#allocation4], 1
    %1378 = vsyncpa %s1377, 1

</llo_original>
